<compile_context>
chip_gen: v5e
topology: v5e:2x2
jax: 0.10.0
libtpu: 0.0.40
codegen_flags: <defaults>
</compile_context>

<pallas_src>
import functools

import jax
import jax.numpy as jnp
from jax.experimental import pallas as pl
from jax.experimental.pallas import tpu as pltpu

# ----------------------------- small config -----------------------------------
B = 8              # batch: >= 8 for full f32 sublane fill (real: training batch)
LATENT = 128       # latent / style dim        (512 in the real model) -- lane-dense
MAP_LAYERS = 4     # mapping MLP depth         (8 in the real model)
IMG = 16           # output spatial size       (256 in the real model)
CH = 3             # RGB channels
CLIP_DIM = 128     # CLIP embedding dim        (512 in the real model) -- lane-dense
NUM_CLIP = 2       # number of CLIP loss models
IMG_FLAT = CH * IMG * IMG          # 768, multiple of 128

SQRT2 = 1.4142135623730951

_VMEM = functools.partial(pl.BlockSpec, memory_space=pltpu.MemorySpace.VMEM)


# ------------------------------ fused Pallas kernel -----------------------------
def _make_kernel(truncation, clip_weights, use_trunc):
    """Build the fused ZSSGAN kernel. mean_latent is only in the signature when
    truncation != 1.0 (no dead input DMA on the default path)."""

    def kernel(*refs):
        if use_trunc:
            (z_ref, map_w_ref, map_b_ref, mean_ref,
             syn_w_hbm, syn_b_ref, proj_hbm, t_dir_ref,
             frozen_ref, trainable_ref, loss_ref,
             syn_w_vmem, proj_vmem, dma_sem) = refs
        else:
            (z_ref, map_w_ref, map_b_ref,
             syn_w_hbm, syn_b_ref, proj_hbm, t_dir_ref,
             frozen_ref, trainable_ref, loss_ref,
             syn_w_vmem, proj_vmem, dma_sem) = refs
            mean_ref = None

        # ---- kick off the big weight DMAs immediately; hide them behind the mapping MLP ----
        syn_cp = pltpu.make_async_copy(syn_w_hbm, syn_w_vmem, dma_sem.at[0])
        proj_cp = pltpu.make_async_copy(proj_hbm, proj_vmem, dma_sem.at[1])
        syn_cp.start()
        proj_cp.start()

        # ---- frozen generator's mapping network: PixelNorm -> [Linear + fused lrelu] x L ----
        x = z_ref[...].astype(jnp.float32)                                   # (B, LATENT)
        x = x * jax.lax.rsqrt(jnp.mean(x * x, axis=-1, keepdims=True) + 1e-8)
        for i in range(MAP_LAYERS):  # static unroll: MXU pops interleave with lrelu VPU work
            y = jnp.dot(x.astype(jnp.bfloat16), map_w_ref[i],                # bf16 x bf16 -> f32 acc
                        preferred_element_type=jnp.float32) + map_b_ref[i]
            x = jnp.where(y >= 0.0, y, 0.2 * y) * SQRT2                      # fused_leaky_relu (f32, v5e-safe)
        w_lat = x                                                            # (B, LATENT)

        # ---- truncation mix (only present when truncation != 1.0) ----
        if use_trunc:
            mean = mean_ref[...]
            w_lat = mean + truncation * (w_lat - mean)

        # ---- merged frozen+trainable synthesis: one (B,LATENT) x (LATENT, 2*IMG_FLAT) matmul ----
        # TODO(synk): full modulated-conv synthesis stack (const input, demodulated 3x3 convs,
        # noise injection, ToRGB skip path) has no compact Pallas equivalent here.
        syn_cp.wait()                                                        # syn_w now resident
        flat = (jnp.dot(w_lat.astype(jnp.bfloat16), syn_w_vmem[...],
                        preferred_element_type=jnp.float32) + syn_b_ref[...])  # (B, 2*IMG_FLAT)
        frozen_flat = flat[:, :IMG_FLAT]
        trainable_flat = flat[:, IMG_FLAT:]
        frozen_ref[...] = frozen_flat
        trainable_ref[...] = trainable_flat

        # ---- merged CLIP directional loss over all CLIP models ----
        # TODO(synk): real CLIPLoss uses a pretrained ViT image encoder + text tokenizer;
        # here "encoding" is a linear projection to CLIP space + L2 normalize.
        # TODO(synk): a trained version needs an in-kernel stop_gradient on the frozen
        # branch (torch.no_grad in the reference); forward-only here.
        def l2n(v):
            return v * jax.lax.rsqrt(jnp.sum(v * v, axis=-1, keepdims=True) + 1e-8)

        proj_cp.wait()                                                       # proj now resident
        # Two dots against the same resident proj: avoids an axis-0 concat (XLU
        # relayout) + extra (2B, IMG_FLAT) f32->bf16 repack of the stacked images.
        f_frozen = jnp.dot(frozen_flat.astype(jnp.bfloat16), proj_vmem[...],
                           preferred_element_type=jnp.float32)               # (B, NUM_CLIP*CLIP_DIM)
        f_train = jnp.dot(trainable_flat.astype(jnp.bfloat16), proj_vmem[...],
                          preferred_element_type=jnp.float32)                # (B, NUM_CLIP*CLIP_DIM)

        t_dir = t_dir_ref[...]                                               # (NUM_CLIP, CLIP_DIM), pre-normalized

        total = jnp.zeros((1, 1), jnp.float32)
        for m in range(NUM_CLIP):  # static unroll
            ff = l2n(f_frozen[:, m * CLIP_DIM:(m + 1) * CLIP_DIM])           # (B, CLIP_DIM)
            ft = l2n(f_train[:, m * CLIP_DIM:(m + 1) * CLIP_DIM])            # (B, CLIP_DIM)
            img_dir = l2n(ft - ff)                                           # (B, CLIP_DIM)
            cos = jnp.sum(img_dir * t_dir[m:m + 1, :], axis=-1, keepdims=True)  # (B, 1)
            loss_m = jnp.sum(1.0 - cos, axis=0, keepdims=True) * (1.0 / B)   # (1, 1)
            total = total + clip_weights[m] * loss_m                         # static weight

        loss_ref[...] = jnp.broadcast_to(total, loss_ref.shape)              # lane-dense (1,128) row

    return kernel


# ------------------------------ ZSSGAN forward ----------------------------------
def zssgan_forward(styles, frozen_params, gen_bundle, mean_latent, clip_bundle,
                   truncation=1.0):
    """Mirrors ZSSGAN.forward (inference path, input_is_latent=False, training=False).

    Returns ([frozen_img, trainable_img], clip_loss) just like the PyTorch module.
    One fused pallas_call; only reshape/scalar-extract happen outside.
    """
    z = styles[0]
    truncation = float(truncation)
    use_trunc = truncation != 1.0
    kernel = _make_kernel(truncation, clip_bundle["weights"], use_trunc)

    args = [z, frozen_params["map_w"], frozen_params["map_b"]]
    in_specs = [_VMEM(), _VMEM(), _VMEM()]
    if use_trunc:
        args.append(mean_latent)
        in_specs.append(_VMEM())
    # syn_w / proj stay in HBM (pl.ANY) and are copied manually inside the kernel
    # so their DMA overlaps the mapping MLP.
    args += [gen_bundle["syn_w"], gen_bundle["syn_b"],
             clip_bundle["proj"], clip_bundle["t_dir"]]
    in_specs += [pl.BlockSpec(memory_space=pl.ANY), _VMEM(),
                 pl.BlockSpec(memory_space=pl.ANY), _VMEM()]

    frozen_flat, trainable_flat, loss_row = pl.pallas_call(
        kernel,
        out_shape=(
            jax.ShapeDtypeStruct((B, IMG_FLAT), jnp.float32),
            jax.ShapeDtypeStruct((B, IMG_FLAT), jnp.float32),
            jax.ShapeDtypeStruct((1, 128), jnp.float32),
        ),
        in_specs=in_specs,
        out_specs=(_VMEM(), _VMEM(), _VMEM()),
        scratch_shapes=[
            pltpu.VMEM((LATENT, 2 * IMG_FLAT), jnp.bfloat16),          # syn_w landing buffer
            pltpu.VMEM((IMG_FLAT, NUM_CLIP * CLIP_DIM), jnp.bfloat16),  # proj landing buffer
            pltpu.SemaphoreType.DMA((2,)),
        ],
    )(*args)

    # frozen path is torch.no_grad() in the reference; inference-only here.
    frozen_img = jax.lax.stop_gradient(frozen_flat).reshape(B, CH, IMG, IMG)   # NCHW
    trainable_img = trainable_flat.reshape(B, CH, IMG, IMG)
    clip_loss = loss_row[0, 0]
    return [frozen_img, trainable_img], clip_loss


# ------------------------------ init-time helpers --------------------------------
def _mapping_ref(z, map_w, map_b):
    """Pure-JAX mapping network (used once at init for mean_latent, like SG2Generator)."""
    x = z
    x = x * jax.lax.rsqrt(jnp.mean(x * x, axis=-1, keepdims=True) + 1e-8)
    for i in range(MAP_LAYERS):
        y = x @ map_w[i].astype(jnp.float32) + map_b[i]
        x = jnp.where(y >= 0.0, y, 0.2 * y) * SQRT2
    return x


def compute_mean_latent(params, key, n_samples=64):
    """Analogue of generator.mean_latent(4096): average mapped w over random z (init-time)."""
    z = jax.random.normal(key, (n_samples, LATENT), jnp.float32)
    w = _mapping_ref(z, params["map_w"], params["map_b"])
    return jnp.mean(w, axis=0, keepdims=True)                             # (1, LATENT)


def prepare_generator_bundle(frozen_params, trainable_params):
    """Merge frozen+trainable synthesis weights along N (one MXU stream), bf16 once."""
    syn_w = jnp.concatenate([frozen_params["syn_w"], trainable_params["syn_w"]],
                            axis=1).astype(jnp.bfloat16)                  # (LATENT, 2*IMG_FLAT)
    syn_b = jnp.concatenate([frozen_params["syn_b"], trainable_params["syn_b"]], axis=1)
    return {"syn_w": syn_w, "syn_b": syn_b}


def prepare_clip_bundle(clip_models, clip_model_weights):
    """Merge all CLIP models: proj along N (lane width = NUM_CLIP*CLIP_DIM = 256),
    precompute the normalized text direction once (constant across forwards)."""
    names = list(clip_models.keys())
    proj = jnp.concatenate([clip_models[n]["proj"] for n in names],
                           axis=1).astype(jnp.bfloat16)                   # (IMG_FLAT, NUM_CLIP*CLIP_DIM)

    def l2n(v):
        return v / jnp.sqrt(jnp.sum(v * v, axis=-1, keepdims=True) + 1e-8)

    t_dir = jnp.concatenate(
        [l2n(l2n(clip_models[n]["t_tgt"]) - l2n(clip_models[n]["t_src"])) for n in names],
        axis=0)                                                           # (NUM_CLIP, CLIP_DIM)
    weights = tuple(float(clip_model_weights[n]) for n in names)
    return {"proj": proj, "t_dir": t_dir, "weights": weights}


# ------------------------------ parameter init -----------------------------------
def make_generator_params(key, perturb=0.0):
    k1, k2, k3, k4, k5 = jax.random.split(key, 5)
    map_w = (jax.random.normal(k1, (MAP_LAYERS, LATENT, LATENT), jnp.float32)
             / jnp.sqrt(LATENT)).astype(jnp.bfloat16)                     # bf16 MXU weights
    map_b = 0.01 * jax.random.normal(k2, (MAP_LAYERS, 1, LATENT), jnp.float32)
    syn_w = jax.random.normal(k3, (LATENT, IMG_FLAT), jnp.float32) / jnp.sqrt(LATENT)
    syn_b = 0.01 * jax.random.normal(k4, (1, IMG_FLAT), jnp.float32)
    if perturb:
        syn_w = syn_w + perturb * jax.random.normal(k5, syn_w.shape, jnp.float32)
    return {"map_w": map_w, "map_b": map_b, "syn_w": syn_w, "syn_b": syn_b}


def make_clip_model(key):
    k1, k2, k3 = jax.random.split(key, 3)
    return {
        "proj": jax.random.normal(k1, (IMG_FLAT, CLIP_DIM), jnp.float32) / jnp.sqrt(IMG_FLAT),
        "t_src": jax.random.normal(k2, (1, CLIP_DIM), jnp.float32),   # "source_class" embedding
        "t_tgt": jax.random.normal(k3, (1, CLIP_DIM), jnp.float32),   # "target_class" embedding
    }


# ------------------------------ main ---------------------------------------------
if __name__ == "__main__":
    key = jax.random.PRNGKey(0)
    k_z, k_frozen, k_clip1, k_clip2, k_mean = jax.random.split(key, 5)

    # Frozen and trainable generators start from the same "checkpoint"; the trainable
    # one gets a tiny deterministic perturbation so the directional loss is nonzero.
    frozen_params = make_generator_params(k_frozen)
    trainable_params = make_generator_params(k_frozen, perturb=0.05)

    clip_models = {
        "ViT-B/32": make_clip_model(k_clip1),
        "ViT-B/16": make_clip_model(k_clip2),
    }
    clip_model_weights = {"ViT-B/32": 1.0, "ViT-B/16": 0.5}

    # One-time model setup (mirrors ZSSGAN.__init__ / SG2Generator.__init__):
    # mean_latent and the CLIP text direction are constants computed once, not per forward.
    mean_latent = compute_mean_latent(frozen_params, k_mean)
    gen_bundle = prepare_generator_bundle(frozen_params, trainable_params)
    clip_bundle = prepare_clip_bundle(clip_models, clip_model_weights)
    # TODO(synk): determine_opt_layers (inner SGD loop over w codes + topk layer selection)
    # is a training-time optimizer routine with no kernel equivalent.

    styles = [jax.random.normal(k_z, (B, LATENT), jnp.float32)]

    imgs, clip_loss = zssgan_forward(styles, frozen_params, gen_bundle,
                                     mean_latent, clip_bundle, truncation=1.0)
    jax.block_until_ready(imgs[0])
    jax.block_until_ready(imgs[1])
    jax.block_until_ready(clip_loss)

    assert imgs[0].shape == (B, CH, IMG, IMG)
    assert imgs[1].shape == (B, CH, IMG, IMG)
    assert clip_loss.shape == ()
    assert bool(jnp.isfinite(clip_loss))
    print("KERNEL_OK")
</pallas_src>

<mosaic_0001>
module attributes {stable_mosaic.version = 11 : i64} {
  func.func @kernel(%arg0: memref<8x128xf32, #tpu.memory_space<vmem>>, %arg1: memref<4x128x128xbf16, #tpu.memory_space<vmem>>, %arg2: memref<4x1x128xf32, #tpu.memory_space<vmem>>, %arg3: memref<128x1536xbf16, #tpu.memory_space<any>>, %arg4: memref<1x1536xf32, #tpu.memory_space<vmem>>, %arg5: memref<768x256xbf16, #tpu.memory_space<any>>, %arg6: memref<2x128xf32, #tpu.memory_space<vmem>>, %arg7: memref<8x768xf32, #tpu.memory_space<vmem>>, %arg8: memref<8x768xf32, #tpu.memory_space<vmem>>, %arg9: memref<1x128xf32, #tpu.memory_space<vmem>>, %arg10: memref<128x1536xbf16, #tpu.memory_space<vmem>>, %arg11: memref<768x256xbf16, #tpu.memory_space<vmem>>, %arg12: memref<2x!tpu.dma_semaphore, #tpu.memory_space<semaphore_mem>>) attributes {dimension_semantics = [], scalar_prefetch = 0 : i64, scratch_operands = 3 : i64, tpu.core_type = #tpu.core_type<tc>} {
    %c0_i32 = arith.constant 0 : i32
    %0 = tpu.memref_slice %arg12[%c0_i32] : memref<2x!tpu.dma_semaphore, #tpu.memory_space<semaphore_mem>> -> memref<1x!tpu.dma_semaphore, #tpu.memory_space<semaphore_mem>>
    %1 = tpu.memref_squeeze %0 : memref<1x!tpu.dma_semaphore, #tpu.memory_space<semaphore_mem>> -> memref<!tpu.dma_semaphore, #tpu.memory_space<semaphore_mem>>
    tpu.enqueue_dma source(%arg3 : memref<128x1536xbf16, #tpu.memory_space<any>>) target(%arg10 : memref<128x1536xbf16, #tpu.memory_space<vmem>>) target_semaphore(%1 : memref<!tpu.dma_semaphore, #tpu.memory_space<semaphore_mem>>)
    %c1_i32 = arith.constant 1 : i32
    %2 = tpu.memref_slice %arg12[%c1_i32] : memref<2x!tpu.dma_semaphore, #tpu.memory_space<semaphore_mem>> -> memref<1x!tpu.dma_semaphore, #tpu.memory_space<semaphore_mem>>
    %3 = tpu.memref_squeeze %2 : memref<1x!tpu.dma_semaphore, #tpu.memory_space<semaphore_mem>> -> memref<!tpu.dma_semaphore, #tpu.memory_space<semaphore_mem>>
    tpu.enqueue_dma source(%arg5 : memref<768x256xbf16, #tpu.memory_space<any>>) target(%arg11 : memref<768x256xbf16, #tpu.memory_space<vmem>>) target_semaphore(%3 : memref<!tpu.dma_semaphore, #tpu.memory_space<semaphore_mem>>)
    %c0 = arith.constant 0 : index
    %c0_0 = arith.constant 0 : index
    %4 = vector.load %arg0[%c0, %c0_0] : memref<8x128xf32, #tpu.memory_space<vmem>>, vector<8x128xf32>
    %5 = arith.mulf %4, %4 : vector<8x128xf32>
    %cst = arith.constant dense<0.000000e+00> : vector<8xf32>
    %6 = vector.multi_reduction <add>, %5, %cst [1] : vector<8x128xf32> to vector<8xf32>
    %7 = vector.shape_cast %6 : vector<8xf32> to vector<8x1xf32>
    %cst_1 = arith.constant 1.280000e+02 : f32
    %8 = vector.broadcast %cst_1 : f32 to vector<8x1xf32>
    %9 = arith.divf %7, %8 : vector<8x1xf32>
    %cst_2 = arith.constant 9.99999993E-9 : f32
    %10 = vector.broadcast %cst_2 : f32 to vector<8x1xf32>
    %11 = arith.addf %9, %10 : vector<8x1xf32>
    %12 = math.rsqrt %11 : vector<8x1xf32>
    %13 = vector.broadcast %12 : vector<8x1xf32> to vector<8x128xf32>
    %14 = arith.mulf %4, %13 : vector<8x128xf32>
    %15 = arith.truncf %14 : vector<8x128xf32> to vector<8x128xbf16>
    %c0_3 = arith.constant 0 : index
    %c0_4 = arith.constant 0 : index
    %c0_5 = arith.constant 0 : index
    %16 = vector.load %arg1[%c0_3, %c0_4, %c0_5] : memref<4x128x128xbf16, #tpu.memory_space<vmem>>, vector<1x128x128xbf16>
    %17 = vector.shape_cast %16 : vector<1x128x128xbf16> to vector<128x128xbf16>
    %cst_6 = arith.constant dense<0.000000e+00> : vector<8x128xf32>
    %18 = tpu.matmul %15, %17, %cst_6 {dimension_numbers = #tpu.dot_dimension_numbers<[1], [0], [0], [1], [0, 0, 1, 1], [], []>} : vector<8x128xbf16>, vector<128x128xbf16>, vector<8x128xf32> -> vector<8x128xf32>
    %c0_7 = arith.constant 0 : index
    %c0_8 = arith.constant 0 : index
    %c0_9 = arith.constant 0 : index
    %19 = vector.load %arg2[%c0_7, %c0_8, %c0_9] : memref<4x1x128xf32, #tpu.memory_space<vmem>>, vector<1x1x128xf32>
    %20 = vector.shape_cast %19 : vector<1x1x128xf32> to vector<1x128xf32>
    %21 = vector.broadcast %20 : vector<1x128xf32> to vector<8x128xf32>
    %22 = arith.addf %18, %21 : vector<8x128xf32>
    %cst_10 = arith.constant 0.000000e+00 : f32
    %23 = vector.broadcast %cst_10 : f32 to vector<8x128xf32>
    %24 = arith.cmpf oge, %22, %23 : vector<8x128xf32>
    %cst_11 = arith.constant 2.000000e-01 : f32
    %25 = vector.broadcast %cst_11 : f32 to vector<8x128xf32>
    %26 = arith.mulf %25, %22 : vector<8x128xf32>
    %27 = arith.select %24, %22, %26 : vector<8x128xi1>, vector<8x128xf32>
    %cst_12 = arith.constant 1.41421354 : f32
    %28 = vector.broadcast %cst_12 : f32 to vector<8x128xf32>
    %29 = arith.mulf %27, %28 : vector<8x128xf32>
    %30 = arith.truncf %29 : vector<8x128xf32> to vector<8x128xbf16>
    %c1 = arith.constant 1 : index
    %c0_13 = arith.constant 0 : index
    %c0_14 = arith.constant 0 : index
    %31 = vector.load %arg1[%c1, %c0_13, %c0_14] : memref<4x128x128xbf16, #tpu.memory_space<vmem>>, vector<1x128x128xbf16>
    %32 = vector.shape_cast %31 : vector<1x128x128xbf16> to vector<128x128xbf16>
    %cst_15 = arith.constant dense<0.000000e+00> : vector<8x128xf32>
    %33 = tpu.matmul %30, %32, %cst_15 {dimension_numbers = #tpu.dot_dimension_numbers<[1], [0], [0], [1], [0, 0, 1, 1], [], []>} : vector<8x128xbf16>, vector<128x128xbf16>, vector<8x128xf32> -> vector<8x128xf32>
    %c1_16 = arith.constant 1 : index
    %c0_17 = arith.constant 0 : index
    %c0_18 = arith.constant 0 : index
    %34 = vector.load %arg2[%c1_16, %c0_17, %c0_18] : memref<4x1x128xf32, #tpu.memory_space<vmem>>, vector<1x1x128xf32>
    %35 = vector.shape_cast %34 : vector<1x1x128xf32> to vector<1x128xf32>
    %36 = vector.broadcast %35 : vector<1x128xf32> to vector<8x128xf32>
    %37 = arith.addf %33, %36 : vector<8x128xf32>
    %cst_19 = arith.constant 0.000000e+00 : f32
    %38 = vector.broadcast %cst_19 : f32 to vector<8x128xf32>
    %39 = arith.cmpf oge, %37, %38 : vector<8x128xf32>
    %cst_20 = arith.constant 2.000000e-01 : f32
    %40 = vector.broadcast %cst_20 : f32 to vector<8x128xf32>
    %41 = arith.mulf %40, %37 : vector<8x128xf32>
    %42 = arith.select %39, %37, %41 : vector<8x128xi1>, vector<8x128xf32>
    %cst_21 = arith.constant 1.41421354 : f32
    %43 = vector.broadcast %cst_21 : f32 to vector<8x128xf32>
    %44 = arith.mulf %42, %43 : vector<8x128xf32>
    %45 = arith.truncf %44 : vector<8x128xf32> to vector<8x128xbf16>
    %c2 = arith.constant 2 : index
    %c0_22 = arith.constant 0 : index
    %c0_23 = arith.constant 0 : index
    %46 = vector.load %arg1[%c2, %c0_22, %c0_23] : memref<4x128x128xbf16, #tpu.memory_space<vmem>>, vector<1x128x128xbf16>
    %47 = vector.shape_cast %46 : vector<1x128x128xbf16> to vector<128x128xbf16>
    %cst_24 = arith.constant dense<0.000000e+00> : vector<8x128xf32>
    %48 = tpu.matmul %45, %47, %cst_24 {dimension_numbers = #tpu.dot_dimension_numbers<[1], [0], [0], [1], [0, 0, 1, 1], [], []>} : vector<8x128xbf16>, vector<128x128xbf16>, vector<8x128xf32> -> vector<8x128xf32>
    %c2_25 = arith.constant 2 : index
    %c0_26 = arith.constant 0 : index
    %c0_27 = arith.constant 0 : index
    %49 = vector.load %arg2[%c2_25, %c0_26, %c0_27] : memref<4x1x128xf32, #tpu.memory_space<vmem>>, vector<1x1x128xf32>
    %50 = vector.shape_cast %49 : vector<1x1x128xf32> to vector<1x128xf32>
    %51 = vector.broadcast %50 : vector<1x128xf32> to vector<8x128xf32>
    %52 = arith.addf %48, %51 : vector<8x128xf32>
    %cst_28 = arith.constant 0.000000e+00 : f32
    %53 = vector.broadcast %cst_28 : f32 to vector<8x128xf32>
    %54 = arith.cmpf oge, %52, %53 : vector<8x128xf32>
    %cst_29 = arith.constant 2.000000e-01 : f32
    %55 = vector.broadcast %cst_29 : f32 to vector<8x128xf32>
    %56 = arith.mulf %55, %52 : vector<8x128xf32>
    %57 = arith.select %54, %52, %56 : vector<8x128xi1>, vector<8x128xf32>
    %cst_30 = arith.constant 1.41421354 : f32
    %58 = vector.broadcast %cst_30 : f32 to vector<8x128xf32>
    %59 = arith.mulf %57, %58 : vector<8x128xf32>
    %60 = arith.truncf %59 : vector<8x128xf32> to vector<8x128xbf16>
    %c3 = arith.constant 3 : index
    %c0_31 = arith.constant 0 : index
    %c0_32 = arith.constant 0 : index
    %61 = vector.load %arg1[%c3, %c0_31, %c0_32] : memref<4x128x128xbf16, #tpu.memory_space<vmem>>, vector<1x128x128xbf16>
    %62 = vector.shape_cast %61 : vector<1x128x128xbf16> to vector<128x128xbf16>
    %cst_33 = arith.constant dense<0.000000e+00> : vector<8x128xf32>
    %63 = tpu.matmul %60, %62, %cst_33 {dimension_numbers = #tpu.dot_dimension_numbers<[1], [0], [0], [1], [0, 0, 1, 1], [], []>} : vector<8x128xbf16>, vector<128x128xbf16>, vector<8x128xf32> -> vector<8x128xf32>
    %c3_34 = arith.constant 3 : index
    %c0_35 = arith.constant 0 : index
    %c0_36 = arith.constant 0 : index
    %64 = vector.load %arg2[%c3_34, %c0_35, %c0_36] : memref<4x1x128xf32, #tpu.memory_space<vmem>>, vector<1x1x128xf32>
    %65 = vector.shape_cast %64 : vector<1x1x128xf32> to vector<1x128xf32>
    %66 = vector.broadcast %65 : vector<1x128xf32> to vector<8x128xf32>
    %67 = arith.addf %63, %66 : vector<8x128xf32>
    %cst_37 = arith.constant 0.000000e+00 : f32
    %68 = vector.broadcast %cst_37 : f32 to vector<8x128xf32>
    %69 = arith.cmpf oge, %67, %68 : vector<8x128xf32>
    %cst_38 = arith.constant 2.000000e-01 : f32
    %70 = vector.broadcast %cst_38 : f32 to vector<8x128xf32>
    %71 = arith.mulf %70, %67 : vector<8x128xf32>
    %72 = arith.select %69, %67, %71 : vector<8x128xi1>, vector<8x128xf32>
    %cst_39 = arith.constant 1.41421354 : f32
    %73 = vector.broadcast %cst_39 : f32 to vector<8x128xf32>
    %74 = arith.mulf %72, %73 : vector<8x128xf32>
    %c0_i32_40 = arith.constant 0 : i32
    %75 = tpu.memref_slice %arg12[%c0_i32_40] : memref<2x!tpu.dma_semaphore, #tpu.memory_space<semaphore_mem>> -> memref<1x!tpu.dma_semaphore, #tpu.memory_space<semaphore_mem>>
    %76 = tpu.memref_squeeze %75 : memref<1x!tpu.dma_semaphore, #tpu.memory_space<semaphore_mem>> -> memref<!tpu.dma_semaphore, #tpu.memory_space<semaphore_mem>>
    tpu.wait_dma2 semaphore(%76 : memref<!tpu.dma_semaphore, #tpu.memory_space<semaphore_mem>>) src(%arg3 : memref<128x1536xbf16, #tpu.memory_space<any>>) dst(%arg10 : memref<128x1536xbf16, #tpu.memory_space<vmem>>)
    %77 = arith.truncf %74 : vector<8x128xf32> to vector<8x128xbf16>
    %c0_41 = arith.constant 0 : index
    %c0_42 = arith.constant 0 : index
    %78 = vector.load %arg10[%c0_41, %c0_42] : memref<128x1536xbf16, #tpu.memory_space<vmem>>, vector<128x1536xbf16>
    %cst_43 = arith.constant dense<0.000000e+00> : vector<8x1536xf32>
    %79 = tpu.matmul %77, %78, %cst_43 {dimension_numbers = #tpu.dot_dimension_numbers<[1], [0], [0], [1], [0, 0, 1, 1], [], []>} : vector<8x128xbf16>, vector<128x1536xbf16>, vector<8x1536xf32> -> vector<8x1536xf32>
    %c0_44 = arith.constant 0 : index
    %c0_45 = arith.constant 0 : index
    %80 = vector.load %arg4[%c0_44, %c0_45] : memref<1x1536xf32, #tpu.memory_space<vmem>>, vector<1x1536xf32>
    %81 = vector.broadcast %80 : vector<1x1536xf32> to vector<8x1536xf32>
    %82 = arith.addf %79, %81 : vector<8x1536xf32>
    %83 = vector.extract_strided_slice %82 {offsets = [0, 0], sizes = [8, 768], strides = [1, 1]} : vector<8x1536xf32> to vector<8x768xf32>
    %84 = vector.extract_strided_slice %82 {offsets = [0, 768], sizes = [8, 768], strides = [1, 1]} : vector<8x1536xf32> to vector<8x768xf32>
    %c0_46 = arith.constant 0 : index
    %c0_47 = arith.constant 0 : index
    %85 = vector.load %arg7[%c0_46, %c0_47] : memref<8x768xf32, #tpu.memory_space<vmem>>, vector<8x768xf32>
    tpu.vector_store %arg7[%c0_46, %c0_47], %83 {strides = array<i32>} : memref<8x768xf32, #tpu.memory_space<vmem>>, vector<8x768xf32>,
    %c0_48 = arith.constant 0 : index
    %c0_49 = arith.constant 0 : index
    %86 = vector.load %arg8[%c0_48, %c0_49] : memref<8x768xf32, #tpu.memory_space<vmem>>, vector<8x768xf32>
    tpu.vector_store %arg8[%c0_48, %c0_49], %84 {strides = array<i32>} : memref<8x768xf32, #tpu.memory_space<vmem>>, vector<8x768xf32>,
    %c1_i32_50 = arith.constant 1 : i32
    %87 = tpu.memref_slice %arg12[%c1_i32_50] : memref<2x!tpu.dma_semaphore, #tpu.memory_space<semaphore_mem>> -> memref<1x!tpu.dma_semaphore, #tpu.memory_space<semaphore_mem>>
    %88 = tpu.memref_squeeze %87 : memref<1x!tpu.dma_semaphore, #tpu.memory_space<semaphore_mem>> -> memref<!tpu.dma_semaphore, #tpu.memory_space<semaphore_mem>>
    tpu.wait_dma2 semaphore(%88 : memref<!tpu.dma_semaphore, #tpu.memory_space<semaphore_mem>>) src(%arg5 : memref<768x256xbf16, #tpu.memory_space<any>>) dst(%arg11 : memref<768x256xbf16, #tpu.memory_space<vmem>>)
    %89 = arith.truncf %83 : vector<8x768xf32> to vector<8x768xbf16>
    %c0_51 = arith.constant 0 : index
    %c0_52 = arith.constant 0 : index
    %90 = vector.load %arg11[%c0_51, %c0_52] : memref<768x256xbf16, #tpu.memory_space<vmem>>, vector<768x256xbf16>
    %cst_53 = arith.constant dense<0.000000e+00> : vector<8x256xf32>
    %91 = tpu.matmul %89, %90, %cst_53 {dimension_numbers = #tpu.dot_dimension_numbers<[1], [0], [0], [1], [0, 0, 1, 1], [], []>} : vector<8x768xbf16>, vector<768x256xbf16>, vector<8x256xf32> -> vector<8x256xf32>
    %92 = arith.truncf %84 : vector<8x768xf32> to vector<8x768xbf16>
    %c0_54 = arith.constant 0 : index
    %c0_55 = arith.constant 0 : index
    %93 = vector.load %arg11[%c0_54, %c0_55] : memref<768x256xbf16, #tpu.memory_space<vmem>>, vector<768x256xbf16>
    %cst_56 = arith.constant dense<0.000000e+00> : vector<8x256xf32>
    %94 = tpu.matmul %92, %93, %cst_56 {dimension_numbers = #tpu.dot_dimension_numbers<[1], [0], [0], [1], [0, 0, 1, 1], [], []>} : vector<8x768xbf16>, vector<768x256xbf16>, vector<8x256xf32> -> vector<8x256xf32>
    %c0_57 = arith.constant 0 : index
    %c0_58 = arith.constant 0 : index
    %95 = vector.load %arg6[%c0_57, %c0_58] : memref<2x128xf32, #tpu.memory_space<vmem>>, vector<2x128xf32>
    %cst_59 = arith.constant 0.000000e+00 : f32
    %96 = vector.broadcast %cst_59 : f32 to vector<1x1xf32>
    %97 = vector.extract_strided_slice %91 {offsets = [0, 0], sizes = [8, 128], strides = [1, 1]} : vector<8x256xf32> to vector<8x128xf32>
    %98 = arith.mulf %97, %97 : vector<8x128xf32>
    %cst_60 = arith.constant dense<0.000000e+00> : vector<8xf32>
    %99 = vector.multi_reduction <add>, %98, %cst_60 [1] : vector<8x128xf32> to vector<8xf32>
    %100 = vector.shape_cast %99 : vector<8xf32> to vector<8x1xf32>
    %cst_61 = arith.constant 9.99999993E-9 : f32
    %101 = vector.broadcast %cst_61 : f32 to vector<8x1xf32>
    %102 = arith.addf %100, %101 : vector<8x1xf32>
    %103 = math.rsqrt %102 : vector<8x1xf32>
    %104 = vector.broadcast %103 : vector<8x1xf32> to vector<8x128xf32>
    %105 = arith.mulf %97, %104 : vector<8x128xf32>
    %106 = vector.extract_strided_slice %94 {offsets = [0, 0], sizes = [8, 128], strides = [1, 1]} : vector<8x256xf32> to vector<8x128xf32>
    %107 = arith.mulf %106, %106 : vector<8x128xf32>
    %cst_62 = arith.constant dense<0.000000e+00> : vector<8xf32>
    %108 = vector.multi_reduction <add>, %107, %cst_62 [1] : vector<8x128xf32> to vector<8xf32>
    %109 = vector.shape_cast %108 : vector<8xf32> to vector<8x1xf32>
    %cst_63 = arith.constant 9.99999993E-9 : f32
    %110 = vector.broadcast %cst_63 : f32 to vector<8x1xf32>
    %111 = arith.addf %109, %110 : vector<8x1xf32>
    %112 = math.rsqrt %111 : vector<8x1xf32>
    %113 = vector.broadcast %112 : vector<8x1xf32> to vector<8x128xf32>
    %114 = arith.mulf %106, %113 : vector<8x128xf32>
    %115 = arith.subf %114, %105 : vector<8x128xf32>
    %116 = arith.mulf %115, %115 : vector<8x128xf32>
    %cst_64 = arith.constant dense<0.000000e+00> : vector<8xf32>
    %117 = vector.multi_reduction <add>, %116, %cst_64 [1] : vector<8x128xf32> to vector<8xf32>
    %118 = vector.shape_cast %117 : vector<8xf32> to vector<8x1xf32>
    %cst_65 = arith.constant 9.99999993E-9 : f32
    %119 = vector.broadcast %cst_65 : f32 to vector<8x1xf32>
    %120 = arith.addf %118, %119 : vector<8x1xf32>
    %121 = math.rsqrt %120 : vector<8x1xf32>
    %122 = vector.broadcast %121 : vector<8x1xf32> to vector<8x128xf32>
    %123 = arith.mulf %115, %122 : vector<8x128xf32>
    %124 = vector.extract_strided_slice %95 {offsets = [0, 0], sizes = [1, 128], strides = [1, 1]} : vector<2x128xf32> to vector<1x128xf32>
    %125 = vector.broadcast %124 : vector<1x128xf32> to vector<8x128xf32>
    %126 = arith.mulf %123, %125 : vector<8x128xf32>
    %cst_66 = arith.constant dense<0.000000e+00> : vector<8xf32>
    %127 = vector.multi_reduction <add>, %126, %cst_66 [1] : vector<8x128xf32> to vector<8xf32>
    %128 = vector.shape_cast %127 : vector<8xf32> to vector<8x1xf32>
    %cst_67 = arith.constant 1.000000e+00 : f32
    %129 = vector.broadcast %cst_67 : f32 to vector<8x1xf32>
    %130 = arith.subf %129, %128 : vector<8x1xf32>
    %cst_68 = arith.constant dense<0.000000e+00> : vector<1xf32>
    %131 = vector.multi_reduction <add>, %130, %cst_68 [0] : vector<8x1xf32> to vector<1xf32>
    %132 = vector.shape_cast %131 : vector<1xf32> to vector<1x1xf32>
    %cst_69 = arith.constant 1.250000e-01 : f32
    %133 = vector.broadcast %cst_69 : f32 to vector<1x1xf32>
    %134 = arith.mulf %132, %133 : vector<1x1xf32>
    %cst_70 = arith.constant 1.000000e+00 : f32
    %135 = vector.broadcast %cst_70 : f32 to vector<1x1xf32>
    %136 = arith.mulf %135, %134 : vector<1x1xf32>
    %137 = arith.addf %96, %136 : vector<1x1xf32>
    %138 = vector.extract_strided_slice %91 {offsets = [0, 128], sizes = [8, 128], strides = [1, 1]} : vector<8x256xf32> to vector<8x128xf32>
    %139 = arith.mulf %138, %138 : vector<8x128xf32>
    %cst_71 = arith.constant dense<0.000000e+00> : vector<8xf32>
    %140 = vector.multi_reduction <add>, %139, %cst_71 [1] : vector<8x128xf32> to vector<8xf32>
    %141 = vector.shape_cast %140 : vector<8xf32> to vector<8x1xf32>
    %cst_72 = arith.constant 9.99999993E-9 : f32
    %142 = vector.broadcast %cst_72 : f32 to vector<8x1xf32>
    %143 = arith.addf %141, %142 : vector<8x1xf32>
    %144 = math.rsqrt %143 : vector<8x1xf32>
    %145 = vector.broadcast %144 : vector<8x1xf32> to vector<8x128xf32>
    %146 = arith.mulf %138, %145 : vector<8x128xf32>
    %147 = vector.extract_strided_slice %94 {offsets = [0, 128], sizes = [8, 128], strides = [1, 1]} : vector<8x256xf32> to vector<8x128xf32>
    %148 = arith.mulf %147, %147 : vector<8x128xf32>
    %cst_73 = arith.constant dense<0.000000e+00> : vector<8xf32>
    %149 = vector.multi_reduction <add>, %148, %cst_73 [1] : vector<8x128xf32> to vector<8xf32>
    %150 = vector.shape_cast %149 : vector<8xf32> to vector<8x1xf32>
    %cst_74 = arith.constant 9.99999993E-9 : f32
    %151 = vector.broadcast %cst_74 : f32 to vector<8x1xf32>
    %152 = arith.addf %150, %151 : vector<8x1xf32>
    %153 = math.rsqrt %152 : vector<8x1xf32>
    %154 = vector.broadcast %153 : vector<8x1xf32> to vector<8x128xf32>
    %155 = arith.mulf %147, %154 : vector<8x128xf32>
    %156 = arith.subf %155, %146 : vector<8x128xf32>
    %157 = arith.mulf %156, %156 : vector<8x128xf32>
    %cst_75 = arith.constant dense<0.000000e+00> : vector<8xf32>
    %158 = vector.multi_reduction <add>, %157, %cst_75 [1] : vector<8x128xf32> to vector<8xf32>
    %159 = vector.shape_cast %158 : vector<8xf32> to vector<8x1xf32>
    %cst_76 = arith.constant 9.99999993E-9 : f32
    %160 = vector.broadcast %cst_76 : f32 to vector<8x1xf32>
    %161 = arith.addf %159, %160 : vector<8x1xf32>
    %162 = math.rsqrt %161 : vector<8x1xf32>
    %163 = vector.broadcast %162 : vector<8x1xf32> to vector<8x128xf32>
    %164 = arith.mulf %156, %163 : vector<8x128xf32>
    %165 = vector.extract_strided_slice %95 {offsets = [1, 0], sizes = [1, 128], strides = [1, 1]} : vector<2x128xf32> to vector<1x128xf32>
    %166 = vector.broadcast %165 : vector<1x128xf32> to vector<8x128xf32>
    %167 = arith.mulf %164, %166 : vector<8x128xf32>
    %cst_77 = arith.constant dense<0.000000e+00> : vector<8xf32>
    %168 = vector.multi_reduction <add>, %167, %cst_77 [1] : vector<8x128xf32> to vector<8xf32>
    %169 = vector.shape_cast %168 : vector<8xf32> to vector<8x1xf32>
    %cst_78 = arith.constant 1.000000e+00 : f32
    %170 = vector.broadcast %cst_78 : f32 to vector<8x1xf32>
    %171 = arith.subf %170, %169 : vector<8x1xf32>
    %cst_79 = arith.constant dense<0.000000e+00> : vector<1xf32>
    %172 = vector.multi_reduction <add>, %171, %cst_79 [0] : vector<8x1xf32> to vector<1xf32>
    %173 = vector.shape_cast %172 : vector<1xf32> to vector<1x1xf32>
    %cst_80 = arith.constant 1.250000e-01 : f32
    %174 = vector.broadcast %cst_80 : f32 to vector<1x1xf32>
    %175 = arith.mulf %173, %174 : vector<1x1xf32>
    %cst_81 = arith.constant 5.000000e-01 : f32
    %176 = vector.broadcast %cst_81 : f32 to vector<1x1xf32>
    %177 = arith.mulf %176, %175 : vector<1x1xf32>
    %178 = arith.addf %137, %177 : vector<1x1xf32>
    %179 = vector.shape_cast %178 : vector<1x1xf32> to vector<1x1xf32>
    %180 = vector.broadcast %179 : vector<1x1xf32> to vector<1x128xf32>
    %c0_82 = arith.constant 0 : index
    %c0_83 = arith.constant 0 : index
    %181 = vector.load %arg9[%c0_82, %c0_83] : memref<1x128xf32, #tpu.memory_space<vmem>>, vector<1x128xf32>
    tpu.vector_store %arg9[%c0_82, %c0_83], %180 {strides = array<i32>} : memref<1x128xf32, #tpu.memory_space<vmem>>, vector<1x128xf32>,
    return
  }
}

</mosaic_0001>

<llo_original>
// kernel: tpu_custom_call.1
$region0: #{tpu_custom_call.1}
  #allocation0 [shape = 'u32[]', space=smem, size = 0x4, offset = 0x4, fixed_abs, tag = 'smem constant byte address 0x4 - core index']
  #allocation1 [shape = 'u32[72,128]{1,0:T(1,128)}', space=vmem, size = 0x9000, scoped, tag = 'internal scratch']
  #allocation2 [shape = 'bf16[128,1536]{1,0:T(8,128)(2,1)}', space=vmem, size = 0x60000, scoped, tag = 'scratch operand']
  #allocation3 [shape = 'bf16[768,256]{1,0:T(8,128)(2,1)}', space=vmem, size = 0x60000, scoped, tag = 'scratch operand']
  #allocation4 [shape = 's32[2]{0}', space=sflag, size = 0x8, scoped, tag = 'scratch operand']
  #allocation17 [shape = 's32[]', space=sflag, size = 0x4, offset = 0, fixed_abs, tag = 'sflag constant byte address 0x0 - dummy sync flag']
  #allocation18 [shape = 's32[]', space=sflag, size = 0x4, offset = 0, fixed_abs, tag = 'sflag constant byte address 0x0 - dummy sync flag']
  #allocation19 [shape = 'u32[]', space=smem, size = 0x4, offset = 0x44, fixed_abs, tag = 'smem constant byte address 0x44 - assertion arg 0']
  #allocation20 [shape = 'u32[]', space=smem, size = 0x4, offset = 0x48, fixed_abs, tag = 'smem constant byte address 0x48 - assertion arg 1']
  #allocation21 [shape = 's32[]', space=sflag, size = 0x4, offset = 0, fixed_abs, tag = 'sflag constant byte address 0x0 - dummy sync flag']
  #allocation22 [shape = 's32[]', space=sflag, size = 0x4, offset = 0, fixed_abs, tag = 'sflag constant byte address 0x0 - dummy sync flag']
  %s0 = inlined_call_operand.hbm [shape: f32[8,128], index: 0, kind: input, shape index: {}]
  %s1 = inlined_call_operand.hbm [shape: bf16[4,128,128], index: 1, kind: input, shape index: {}]
  %s2 = inlined_call_operand.hbm [shape: f32[4,1,128], index: 2, kind: input, shape index: {}]
  %s3 = inlined_call_operand.hbm [shape: bf16[128,1536], index: 3, kind: input, shape index: {}]
  %s4 = inlined_call_operand.hbm [shape: f32[1,1536], index: 4, kind: input, shape index: {}]
  %s5 = inlined_call_operand.hbm [shape: bf16[768,256], index: 5, kind: input, shape index: {}]
  %s6 = inlined_call_operand.vmem [shape: f32[2,128], index: 6, kind: input, shape index: {}]
  %s7 = inlined_call_operand.hbm [shape: f32[8,768], index: 7, kind: output, shape index: {0}]
  %s8 = inlined_call_operand.hbm [shape: f32[8,768], index: 8, kind: output, shape index: {1}]
  %s9 = inlined_call_operand.hbm [shape: f32[1,128], index: 9, kind: output, shape index: {2}]
  %10 = xla_tuple %s7, %s8, %s9
  %s11 = sld [smem:[#allocation0]]
  $region70: #{tpu_custom_call.1} parent=0
    _
  %s13 = ssub.s32 1, %s11
  %s14 = scalar_select 0, %s13, %s11
  $region1: #{tpu_custom_call.1} parent=0
    #allocation5 [shape = 'u8[4096]{0}', space=vmem, size = 0x1000, scoped, tag = 'input window, operand 0, single buffered']
    #allocation6 [shape = 's32[1]{0}', space=sflag, size = 0x4, scoped, tag = 'scoped memory for tpu_custom_call.1']
    #allocation7 [shape = 's32[1]{0}', space=sflag, size = 0x4, scoped, tag = 'scoped memory for tpu_custom_call.1']
    #allocation8 [shape = 'u8[131072]{0}', space=vmem, size = 0x20000, scoped, tag = 'input window, operand 1, single buffered']
    #allocation9 [shape = 's32[1]{0}', space=sflag, size = 0x4, scoped, tag = 'scoped memory for tpu_custom_call.1']
    #allocation10 [shape = 'u8[2048]{0}', space=vmem, size = 0x800, scoped, tag = 'input window, operand 2, single buffered']
    #allocation11 [shape = 'u8[6144]{0}', space=vmem, size = 0x1800, scoped, tag = 'input window, operand 4, single buffered']
    #allocation12 [shape = 's32[1]{0}', space=sflag, size = 0x4, scoped, tag = 'scoped memory for tpu_custom_call.1']
    #allocation13 [shape = 'u8[24576]{0}', space=vmem, size = 0x6000, scoped, tag = 'output window, operand 0, single buffered']
    #allocation14 [shape = 'u8[24576]{0}', space=vmem, size = 0x6000, scoped, tag = 'output window, operand 1, single buffered']
    #allocation15 [shape = 's32[1]{0}', space=sflag, size = 0x4, scoped, tag = 'scoped memory for tpu_custom_call.1']
    #allocation16 [shape = 'u8[512]{0}', space=vmem, size = 0x400, scoped, tag = 'output window, operand 2, single buffered']
    %15 = vsyncpa [#allocation6], 0
    %16 = vsyncpa [#allocation9], 0
    %17 = vsyncpa [#allocation12], 0
    %18 = vsyncpa [#allocation7], 0
    %19 = vsyncpa [#allocation15], 0
    // Predicated region
    $region2: #{tpu_custom_call.1} parent=1 // pred_check
      _
    $region3: #{tpu_custom_call.1} parent=1 // pred_check_branch
      %21 = sbr.rel (0) target = $region5
    $region4: #{tpu_custom_call.1} parent=1 // pred_region
      %23 = vsyncadd [#allocation6], 0
      %s25 = sshll.u32 %s0, 4
      %s26 = int_to_ptr.hbm [resolvable:$true] %s25
      %s27 = sshll.u32 [#allocation5], 4
      %s28 = int_to_ptr.vmem [resolvable:$true] %s27
      %30 = dma.hbm_to_vmem [thread:$0]  %s26, 128, %s28, [#allocation6]
    $region5: #{tpu_custom_call.1} parent=1 // pred_fallthru
      _
    // Predicated region
    $region6: #{tpu_custom_call.1} parent=1 // pred_check
      _
    $region7: #{tpu_custom_call.1} parent=1 // pred_check_branch
      %32 = sbr.rel (0) target = $region9
    $region8: #{tpu_custom_call.1} parent=1 // pred_region
      %34 = vsyncadd [#allocation9], 0
      %s35 = sshll.u32 %s1, 4
      %s36 = int_to_ptr.hbm [resolvable:$true] %s35
      %s37 = sshll.u32 [#allocation8], 4
      %s38 = int_to_ptr.vmem [resolvable:$true] %s37
      %43 = dma.hbm_to_vmem [thread:$0]  %s36, 4096, %s38, [#allocation9], 64, 64, 4
    $region9: #{tpu_custom_call.1} parent=1 // pred_fallthru
      _
    // Predicated region
    $region10: #{tpu_custom_call.1} parent=1 // pred_check
      _
    $region11: #{tpu_custom_call.1} parent=1 // pred_check_branch
      %45 = sbr.rel (0) target = $region13
    $region12: #{tpu_custom_call.1} parent=1 // pred_region
      %47 = vsyncadd [#allocation9], 0
      %s48 = sshll.u32 %s2, 4
      %s49 = int_to_ptr.hbm [resolvable:$true] %s48
      %s50 = sshll.u32 [#allocation10], 4
      %s51 = int_to_ptr.vmem [resolvable:$true] %s50
      %56 = dma.hbm_to_vmem [thread:$0]  %s49, 64, %s51, [#allocation9], 16, 16, 1
    $region13: #{tpu_custom_call.1} parent=1 // pred_fallthru
      _
    // Predicated region
    $region14: #{tpu_custom_call.1} parent=1 // pred_check
      _
    $region15: #{tpu_custom_call.1} parent=1 // pred_check_branch
      %58 = sbr.rel (0) target = $region17
    $region16: #{tpu_custom_call.1} parent=1 // pred_region
      %60 = vsyncadd [#allocation12], 0
      %s62 = sshll.u32 %s4, 4
      %s63 = int_to_ptr.hbm [resolvable:$true] %s62
      %s64 = sshll.u32 [#allocation11], 4
      %s65 = int_to_ptr.vmem [resolvable:$true] %s64
      %67 = dma.hbm_to_vmem [thread:$0]  %s63, 192, %s65, [#allocation12]
    $region17: #{tpu_custom_call.1} parent=1 // pred_fallthru
      _
    // Predicated region
    $region18: #{tpu_custom_call.1} parent=1 // pred_check
      _
    $region19: #{tpu_custom_call.1} parent=1 // pred_check_branch
      %69 = sbr.rel (0) target = $region21
    $region20: #{tpu_custom_call.1} parent=1 // pred_region
      _
    $region21: #{tpu_custom_call.1} parent=1 // pred_fallthru
      _
    // Predicated region
    $region22: #{tpu_custom_call.1} parent=1 // pred_check
      _
    $region23: #{tpu_custom_call.1} parent=1 // pred_check_branch
      %71 = sbr.rel (0) target = $region25
    $region24: #{tpu_custom_call.1} parent=1 // pred_region
      %73 = dma.done [#allocation6], 128
    $region25: #{tpu_custom_call.1} parent=1 // pred_fallthru
      _
    // Predicated region
    $region26: #{tpu_custom_call.1} parent=1 // pred_check
      _
    $region27: #{tpu_custom_call.1} parent=1 // pred_check_branch
      %75 = sbr.rel (0) target = $region29
    $region28: #{tpu_custom_call.1} parent=1 // pred_region
      %77 = dma.done [#allocation9], 4096
    $region29: #{tpu_custom_call.1} parent=1 // pred_fallthru
      _
    // Predicated region
    $region30: #{tpu_custom_call.1} parent=1 // pred_check
      _
    $region31: #{tpu_custom_call.1} parent=1 // pred_check_branch
      %79 = sbr.rel (0) target = $region33
    $region32: #{tpu_custom_call.1} parent=1 // pred_region
      %81 = dma.done [#allocation9], 64
    $region33: #{tpu_custom_call.1} parent=1 // pred_fallthru
      _
    // Predicated region
    $region34: #{tpu_custom_call.1} parent=1 // pred_check
      _
    $region35: #{tpu_custom_call.1} parent=1 // pred_check_branch
      %83 = sbr.rel (0) target = $region37
    $region36: #{tpu_custom_call.1} parent=1 // pred_region
      %85 = dma.done [#allocation12], 192
    $region37: #{tpu_custom_call.1} parent=1 // pred_fallthru
      _
    // Predicated region
    $region38: #{tpu_custom_call.1} parent=1 // pred_check
      _
    $region39: #{tpu_custom_call.1} parent=1 // pred_check_branch
      %87 = sbr.rel target = $region41
    $region40: #{tpu_custom_call.1} parent=1 // pred_region
      %88 = sst [smem:[#allocation19]] [#allocation18]
      %89 = sst [smem:[#allocation20]] [#allocation17]
    $region41: #{tpu_custom_call.1} parent=1 // pred_fallthru
      _
    %91 = shalt.err (0)
    %s93 = sshll.u32 %s3, 4
    %s94 = int_to_ptr.hbm [resolvable:$true] %s93
    %s95 = sshll.u32 [#allocation2], 4
    %s96 = int_to_ptr.vmem [resolvable:$true] %s95
    %98 = dma.hbm_to_vmem [thread:$0]  %s94, 12288, %s96, [#allocation4]
    %s99 = scalar_lea.sflag [#allocation4], 1
    // Predicated region
    $region42: #{tpu_custom_call.1} parent=1 // pred_check
      _
    $region43: #{tpu_custom_call.1} parent=1 // pred_check_branch
      %101 = sbr.rel target = $region45
    $region44: #{tpu_custom_call.1} parent=1 // pred_region
      %102 = sst [smem:[#allocation19]] [#allocation22]
      %103 = sst [smem:[#allocation20]] [#allocation21]
    $region45: #{tpu_custom_call.1} parent=1 // pred_fallthru
      _
    %105 = shalt.err (0)
    %s107 = sshll.u32 %s5, 4
    %s108 = int_to_ptr.hbm [resolvable:$true] %s107
    %s109 = sshll.u32 [#allocation3], 4
    %s110 = int_to_ptr.vmem [resolvable:$true] %s109
    %112 = dma.hbm_to_vmem [thread:$0]  %s108, 12288, %s110, %s99
    %v113 = vld [vmem:[#allocation5] sm:$0xff]
    %v114 = vmul.f32 %v113, %v113
    %115 = vadd.xlane.f32.xlu0 %v114
    %v116 = vpop.xlane.xlu0 %115
    %v117 = vrcp.pop 128.0
    %v118 = vmul.f32 128.0, %v117
    %v119 = vsub.f32 1.0, %v118
    %v120 = vmul.f32 %v117, %v119
    %v121 = vadd.f32 %v117, %v120
    %vm122 = vweird.f32 %v117
    %v123 = vsel %vm122, %v117, %v121
    %v124 = vmul.f32 %v116, %v123
    %v125 = vadd.f32 %v124, 1e-08
    %v126 = vrsqrt.pop %v125
    %v127 = vmul.f32 %v126, %v125
    %v128 = vmul.f32 %v127, %v126
    %v129 = vmul.f32 0.5, %v128
    %v130 = vsub.f32 1.5, %v129
    %v131 = vmul.f32 %v126, %v130
    %vm132 = vweird.f32 %v125
    %vm133 = vweird.f32 %v126
    %vm134 = vmor %vm132, %vm133
    %v135 = vsel %vm134, %v126, %v131
    %v136 = vmul.f32 %v113, %v135
    %v137 = vpack.c.bf16 %v136, %v136
    %v138 = vld [vmem:[#allocation8] sm:$0xf]
    %v139 = vld [vmem:[#allocation8 + $0x4] sm:$0xf]
    %v140 = vld [vmem:[#allocation8 + $0x8] sm:$0xf]
    %v141 = vld [vmem:[#allocation8 + $0xc] sm:$0xf]
    %v142 = vld [vmem:[#allocation8 + $0x10] sm:$0xf]
    %v143 = vld [vmem:[#allocation8 + $0x14] sm:$0xf]
    %v144 = vld [vmem:[#allocation8 + $0x18] sm:$0xf]
    %v145 = vld [vmem:[#allocation8 + $0x1c] sm:$0xf]
    %v146 = vld [vmem:[#allocation8 + $0x20] sm:$0xf]
    %v147 = vld [vmem:[#allocation8 + $0x24] sm:$0xf]
    %v148 = vld [vmem:[#allocation8 + $0x28] sm:$0xf]
    %v149 = vld [vmem:[#allocation8 + $0x2c] sm:$0xf]
    %v150 = vld [vmem:[#allocation8 + $0x30] sm:$0xf]
    %v151 = vld [vmem:[#allocation8 + $0x34] sm:$0xf]
    %v152 = vld [vmem:[#allocation8 + $0x38] sm:$0xf]
    %v153 = vld [vmem:[#allocation8 + $0x3c] sm:$0xf]
    %v154 = vld [vmem:[#allocation10] sm:$0x1]
    %v156 = vperm.slane %v154, 0
    %v174 = vunpack.c.l.b16 %v138
    %v175 = vunpack.c.l.b16 %v139
    %v176 = vunpack.c.l.b16 %v140
    %v177 = vunpack.c.l.b16 %v141
    %v178 = vunpack.c.l.b16 %v142
    %v179 = vunpack.c.l.b16 %v143
    %v180 = vunpack.c.l.b16 %v144
    %v181 = vunpack.c.l.b16 %v145
    %v182 = vunpack.c.l.b16 %v146
    %v183 = vunpack.c.l.b16 %v147
    %v184 = vunpack.c.l.b16 %v148
    %v185 = vunpack.c.l.b16 %v149
    %v186 = vunpack.c.l.b16 %v150
    %v187 = vunpack.c.l.b16 %v151
    %v188 = vunpack.c.l.b16 %v152
    %v189 = vunpack.c.l.b16 %v153
    %v190 = vpack.c.b16 %v175, %v174
    %v191 = vpack.c.b16 %v177, %v176
    %v192 = vpack.c.b16 %v179, %v178
    %v193 = vpack.c.b16 %v181, %v180
    %v194 = vpack.c.b16 %v183, %v182
    %v195 = vpack.c.b16 %v185, %v184
    %v196 = vpack.c.b16 %v187, %v186
    %v197 = vpack.c.b16 %v189, %v188
    %206 = vmatpush.bf16.msra.mxu0 %v197
    %207 = vmatpush.bf16.msra.mxu0 %v196
    %208 = vmatpush.bf16.msra.mxu0 %v195
    %209 = vmatpush.bf16.msra.mxu0 %v194
    %210 = vmatpush.bf16.msra.mxu0 %v193
    %211 = vmatpush.bf16.msra.mxu0 %v192
    %212 = vmatpush.bf16.msra.mxu0 %v191
    %213 = vmatpush.bf16.msra.mxu0 %v190
    %214 = vmatmul.bf16.gmra.mxu0 %v137
    %v215 = vpop.f32.mrf.mxu0
    %v216 = vadd.f32 %v156, %v215
    %v217 = vpop.f32.mrf.mxu0
    %218 = vdwg.mxu0
    %vm219 = vcmp.ge.f32.partialorder %v216, 0.0
    %v220 = vmul.f32 %v216, 0.2
    %v221 = vsel %vm219, %v216, %v220
    %v222 = vmul.f32 %v221, 1.4142135
    %v223 = vpack.c.bf16 %v222, %v222
    %s224 = scalar_lea.vmem [#allocation8], 64
    %v225 = vld [vmem:[%s224] sm:$0xf]
    %v226 = vld [vmem:[%s224 + $0x4] sm:$0xf]
    %v227 = vld [vmem:[%s224 + $0x8] sm:$0xf]
    %v228 = vld [vmem:[%s224 + $0xc] sm:$0xf]
    %v229 = vld [vmem:[%s224 + $0x10] sm:$0xf]
    %v230 = vld [vmem:[%s224 + $0x14] sm:$0xf]
    %v231 = vld [vmem:[%s224 + $0x18] sm:$0xf]
    %v232 = vld [vmem:[%s224 + $0x1c] sm:$0xf]
    %v233 = vld [vmem:[%s224 + $0x20] sm:$0xf]
    %v234 = vld [vmem:[%s224 + $0x24] sm:$0xf]
    %v235 = vld [vmem:[%s224 + $0x28] sm:$0xf]
    %v236 = vld [vmem:[%s224 + $0x2c] sm:$0xf]
    %v237 = vld [vmem:[%s224 + $0x30] sm:$0xf]
    %v238 = vld [vmem:[%s224 + $0x34] sm:$0xf]
    %v239 = vld [vmem:[%s224 + $0x38] sm:$0xf]
    %v240 = vld [vmem:[%s224 + $0x3c] sm:$0xf]
    %s241 = scalar_lea.vmem [#allocation10], 1
    %v242 = vld [vmem:[%s241] sm:$0x1]
    %v244 = vperm.slane %v242, 0
    %v262 = vunpack.c.l.b16 %v225
    %v263 = vunpack.c.l.b16 %v226
    %v264 = vunpack.c.l.b16 %v227
    %v265 = vunpack.c.l.b16 %v228
    %v266 = vunpack.c.l.b16 %v229
    %v267 = vunpack.c.l.b16 %v230
    %v268 = vunpack.c.l.b16 %v231
    %v269 = vunpack.c.l.b16 %v232
    %v270 = vunpack.c.l.b16 %v233
    %v271 = vunpack.c.l.b16 %v234
    %v272 = vunpack.c.l.b16 %v235
    %v273 = vunpack.c.l.b16 %v236
    %v274 = vunpack.c.l.b16 %v237
    %v275 = vunpack.c.l.b16 %v238
    %v276 = vunpack.c.l.b16 %v239
    %v277 = vunpack.c.l.b16 %v240
    %v278 = vpack.c.b16 %v263, %v262
    %v279 = vpack.c.b16 %v265, %v264
    %v280 = vpack.c.b16 %v267, %v266
    %v281 = vpack.c.b16 %v269, %v268
    %v282 = vpack.c.b16 %v271, %v270
    %v283 = vpack.c.b16 %v273, %v272
    %v284 = vpack.c.b16 %v275, %v274
    %v285 = vpack.c.b16 %v277, %v276
    %294 = vmatpush.bf16.msra.mxu0 %v285
    %295 = vmatpush.bf16.msra.mxu0 %v284
    %296 = vmatpush.bf16.msra.mxu0 %v283
    %297 = vmatpush.bf16.msra.mxu0 %v282
    %298 = vmatpush.bf16.msra.mxu0 %v281
    %299 = vmatpush.bf16.msra.mxu0 %v280
    %300 = vmatpush.bf16.msra.mxu0 %v279
    %301 = vmatpush.bf16.msra.mxu0 %v278
    %302 = vmatmul.bf16.gmra.mxu0 %v223
    %v303 = vpop.f32.mrf.mxu0
    %v304 = vadd.f32 %v244, %v303
    %v305 = vpop.f32.mrf.mxu0
    %306 = vdwg.mxu0
    %vm307 = vcmp.ge.f32.partialorder %v304, 0.0
    %v308 = vmul.f32 %v304, 0.2
    %v309 = vsel %vm307, %v304, %v308
    %v310 = vmul.f32 %v309, 1.4142135
    %v311 = vpack.c.bf16 %v310, %v310
    %s312 = scalar_lea.vmem [#allocation8], 128
    %v313 = vld [vmem:[%s312] sm:$0xf]
    %v314 = vld [vmem:[%s312 + $0x4] sm:$0xf]
    %v315 = vld [vmem:[%s312 + $0x8] sm:$0xf]
    %v316 = vld [vmem:[%s312 + $0xc] sm:$0xf]
    %v317 = vld [vmem:[%s312 + $0x10] sm:$0xf]
    %v318 = vld [vmem:[%s312 + $0x14] sm:$0xf]
    %v319 = vld [vmem:[%s312 + $0x18] sm:$0xf]
    %v320 = vld [vmem:[%s312 + $0x1c] sm:$0xf]
    %v321 = vld [vmem:[%s312 + $0x20] sm:$0xf]
    %v322 = vld [vmem:[%s312 + $0x24] sm:$0xf]
    %v323 = vld [vmem:[%s312 + $0x28] sm:$0xf]
    %v324 = vld [vmem:[%s312 + $0x2c] sm:$0xf]
    %v325 = vld [vmem:[%s312 + $0x30] sm:$0xf]
    %v326 = vld [vmem:[%s312 + $0x34] sm:$0xf]
    %v327 = vld [vmem:[%s312 + $0x38] sm:$0xf]
    %v328 = vld [vmem:[%s312 + $0x3c] sm:$0xf]
    %s329 = scalar_lea.vmem [#allocation10], 2
    %v330 = vld [vmem:[%s329] sm:$0x1]
    %v332 = vperm.slane %v330, 0
    %v350 = vunpack.c.l.b16 %v313
    %v351 = vunpack.c.l.b16 %v314
    %v352 = vunpack.c.l.b16 %v315
    %v353 = vunpack.c.l.b16 %v316
    %v354 = vunpack.c.l.b16 %v317
    %v355 = vunpack.c.l.b16 %v318
    %v356 = vunpack.c.l.b16 %v319
    %v357 = vunpack.c.l.b16 %v320
    %v358 = vunpack.c.l.b16 %v321
    %v359 = vunpack.c.l.b16 %v322
    %v360 = vunpack.c.l.b16 %v323
    %v361 = vunpack.c.l.b16 %v324
    %v362 = vunpack.c.l.b16 %v325
    %v363 = vunpack.c.l.b16 %v326
    %v364 = vunpack.c.l.b16 %v327
    %v365 = vunpack.c.l.b16 %v328
    %v366 = vpack.c.b16 %v351, %v350
    %v367 = vpack.c.b16 %v353, %v352
    %v368 = vpack.c.b16 %v355, %v354
    %v369 = vpack.c.b16 %v357, %v356
    %v370 = vpack.c.b16 %v359, %v358
    %v371 = vpack.c.b16 %v361, %v360
    %v372 = vpack.c.b16 %v363, %v362
    %v373 = vpack.c.b16 %v365, %v364
    %382 = vmatpush.bf16.msra.mxu0 %v373
    %383 = vmatpush.bf16.msra.mxu0 %v372
    %384 = vmatpush.bf16.msra.mxu0 %v371
    %385 = vmatpush.bf16.msra.mxu0 %v370
    %386 = vmatpush.bf16.msra.mxu0 %v369
    %387 = vmatpush.bf16.msra.mxu0 %v368
    %388 = vmatpush.bf16.msra.mxu0 %v367
    %389 = vmatpush.bf16.msra.mxu0 %v366
    %390 = vmatmul.bf16.gmra.mxu0 %v311
    %v391 = vpop.f32.mrf.mxu0
    %v392 = vadd.f32 %v332, %v391
    %v393 = vpop.f32.mrf.mxu0
    %394 = vdwg.mxu0
    %vm395 = vcmp.ge.f32.partialorder %v392, 0.0
    %v396 = vmul.f32 %v392, 0.2
    %v397 = vsel %vm395, %v392, %v396
    %v398 = vmul.f32 %v397, 1.4142135
    %v399 = vpack.c.bf16 %v398, %v398
    %s400 = scalar_lea.vmem [#allocation8], 192
    %v401 = vld [vmem:[%s400] sm:$0xf]
    %v402 = vld [vmem:[%s400 + $0x4] sm:$0xf]
    %v403 = vld [vmem:[%s400 + $0x8] sm:$0xf]
    %v404 = vld [vmem:[%s400 + $0xc] sm:$0xf]
    %v405 = vld [vmem:[%s400 + $0x10] sm:$0xf]
    %v406 = vld [vmem:[%s400 + $0x14] sm:$0xf]
    %v407 = vld [vmem:[%s400 + $0x18] sm:$0xf]
    %v408 = vld [vmem:[%s400 + $0x1c] sm:$0xf]
    %v409 = vld [vmem:[%s400 + $0x20] sm:$0xf]
    %v410 = vld [vmem:[%s400 + $0x24] sm:$0xf]
    %v411 = vld [vmem:[%s400 + $0x28] sm:$0xf]
    %v412 = vld [vmem:[%s400 + $0x2c] sm:$0xf]
    %v413 = vld [vmem:[%s400 + $0x30] sm:$0xf]
    %v414 = vld [vmem:[%s400 + $0x34] sm:$0xf]
    %v415 = vld [vmem:[%s400 + $0x38] sm:$0xf]
    %v416 = vld [vmem:[%s400 + $0x3c] sm:$0xf]
    %s417 = scalar_lea.vmem [#allocation10], 3
    %v418 = vld [vmem:[%s417] sm:$0x1]
    %v420 = vperm.slane %v418, 0
    %v438 = vunpack.c.l.b16 %v401
    %v439 = vunpack.c.l.b16 %v402
    %v440 = vunpack.c.l.b16 %v403
    %v441 = vunpack.c.l.b16 %v404
    %v442 = vunpack.c.l.b16 %v405
    %v443 = vunpack.c.l.b16 %v406
    %v444 = vunpack.c.l.b16 %v407
    %v445 = vunpack.c.l.b16 %v408
    %v446 = vunpack.c.l.b16 %v409
    %v447 = vunpack.c.l.b16 %v410
    %v448 = vunpack.c.l.b16 %v411
    %v449 = vunpack.c.l.b16 %v412
    %v450 = vunpack.c.l.b16 %v413
    %v451 = vunpack.c.l.b16 %v414
    %v452 = vunpack.c.l.b16 %v415
    %v453 = vunpack.c.l.b16 %v416
    %v454 = vpack.c.b16 %v439, %v438
    %v455 = vpack.c.b16 %v441, %v440
    %v456 = vpack.c.b16 %v443, %v442
    %v457 = vpack.c.b16 %v445, %v444
    %v458 = vpack.c.b16 %v447, %v446
    %v459 = vpack.c.b16 %v449, %v448
    %v460 = vpack.c.b16 %v451, %v450
    %v461 = vpack.c.b16 %v453, %v452
    %470 = vmatpush.bf16.msra.mxu0 %v461
    %471 = vmatpush.bf16.msra.mxu0 %v460
    %472 = vmatpush.bf16.msra.mxu0 %v459
    %473 = vmatpush.bf16.msra.mxu0 %v458
    %474 = vmatpush.bf16.msra.mxu0 %v457
    %475 = vmatpush.bf16.msra.mxu0 %v456
    %476 = vmatpush.bf16.msra.mxu0 %v455
    %477 = vmatpush.bf16.msra.mxu0 %v454
    %478 = vmatmul.bf16.gmra.mxu0 %v399
    %v479 = vpop.f32.mrf.mxu0
    %v480 = vadd.f32 %v420, %v479
    %v481 = vpop.f32.mrf.mxu0
    %482 = vdwg.mxu0
    %vm483 = vcmp.ge.f32.partialorder %v480, 0.0
    %v484 = vmul.f32 %v480, 0.2
    %v485 = vsel %vm483, %v480, %v484
    %v486 = vmul.f32 %v485, 1.4142135
    %s487 = smul.u32 4, 16
    %s488 = smul.u32 %s487, 12
    %s489 = sshll.u32 %s488, 4
    %490 = dma.done [#allocation4], %s489
    %v491 = vpack.c.bf16 %v486, %v486
    %v492 = vld [vmem:[#allocation2] sm:$0xff]
    %v493 = vld [vmem:[#allocation2 + $0x8] sm:$0xff]
    %v494 = vld [vmem:[#allocation2 + $0x10] sm:$0xff]
    %v495 = vld [vmem:[#allocation2 + $0x18] sm:$0xff]
    %v496 = vld [vmem:[#allocation2 + $0x20] sm:$0xff]
    %v497 = vld [vmem:[#allocation2 + $0x28] sm:$0xff]
    %v498 = vld [vmem:[#allocation2 + $0x30] sm:$0xff]
    %v499 = vld [vmem:[#allocation2 + $0x38] sm:$0xff]
    %v500 = vld [vmem:[#allocation2 + $0x40] sm:$0xff]
    %v501 = vld [vmem:[#allocation2 + $0x48] sm:$0xff]
    %v502 = vld [vmem:[#allocation2 + $0x50] sm:$0xff]
    %v503 = vld [vmem:[#allocation2 + $0x58] sm:$0xff]
    %v504 = vld [vmem:[#allocation2 + $0x60] sm:$0xff]
    %v505 = vld [vmem:[#allocation2 + $0x68] sm:$0xff]
    %v506 = vld [vmem:[#allocation2 + $0x70] sm:$0xff]
    %v507 = vld [vmem:[#allocation2 + $0x78] sm:$0xff]
    %v508 = vld [vmem:[#allocation2 + $0x80] sm:$0xff]
    %v509 = vld [vmem:[#allocation2 + $0x88] sm:$0xff]
    %v510 = vld [vmem:[#allocation2 + $0x90] sm:$0xff]
    %v511 = vld [vmem:[#allocation2 + $0x98] sm:$0xff]
    %v512 = vld [vmem:[#allocation2 + $0xa0] sm:$0xff]
    %v513 = vld [vmem:[#allocation2 + $0xa8] sm:$0xff]
    %v514 = vld [vmem:[#allocation2 + $0xb0] sm:$0xff]
    %v515 = vld [vmem:[#allocation2 + $0xb8] sm:$0xff]
    %v516 = vld [vmem:[#allocation2 + $0xc0] sm:$0xff]
    %v517 = vld [vmem:[#allocation2 + $0xc8] sm:$0xff]
    %v518 = vld [vmem:[#allocation2 + $0xd0] sm:$0xff]
    %v519 = vld [vmem:[#allocation2 + $0xd8] sm:$0xff]
    %v520 = vld [vmem:[#allocation2 + $0xe0] sm:$0xff]
    %v521 = vld [vmem:[#allocation2 + $0xe8] sm:$0xff]
    %v522 = vld [vmem:[#allocation2 + $0xf0] sm:$0xff]
    %v523 = vld [vmem:[#allocation2 + $0xf8] sm:$0xff]
    %v524 = vld [vmem:[#allocation2 + $0x100] sm:$0xff]
    %v525 = vld [vmem:[#allocation2 + $0x108] sm:$0xff]
    %v526 = vld [vmem:[#allocation2 + $0x110] sm:$0xff]
    %v527 = vld [vmem:[#allocation2 + $0x118] sm:$0xff]
    %v528 = vld [vmem:[#allocation2 + $0x120] sm:$0xff]
    %v529 = vld [vmem:[#allocation2 + $0x128] sm:$0xff]
    %v530 = vld [vmem:[#allocation2 + $0x130] sm:$0xff]
    %v531 = vld [vmem:[#allocation2 + $0x138] sm:$0xff]
    %v532 = vld [vmem:[#allocation2 + $0x140] sm:$0xff]
    %v533 = vld [vmem:[#allocation2 + $0x148] sm:$0xff]
    %v534 = vld [vmem:[#allocation2 + $0x150] sm:$0xff]
    %v535 = vld [vmem:[#allocation2 + $0x158] sm:$0xff]
    %v536 = vld [vmem:[#allocation2 + $0x160] sm:$0xff]
    %v537 = vld [vmem:[#allocation2 + $0x168] sm:$0xff]
    %v538 = vld [vmem:[#allocation2 + $0x170] sm:$0xff]
    %v539 = vld [vmem:[#allocation2 + $0x178] sm:$0xff]
    %v540 = vld [vmem:[#allocation2 + $0x180] sm:$0xff]
    %v541 = vld [vmem:[#allocation2 + $0x188] sm:$0xff]
    %v542 = vld [vmem:[#allocation2 + $0x190] sm:$0xff]
    %v543 = vld [vmem:[#allocation2 + $0x198] sm:$0xff]
    %v544 = vld [vmem:[#allocation2 + $0x1a0] sm:$0xff]
    %v545 = vld [vmem:[#allocation2 + $0x1a8] sm:$0xff]
    %v546 = vld [vmem:[#allocation2 + $0x1b0] sm:$0xff]
    %v547 = vld [vmem:[#allocation2 + $0x1b8] sm:$0xff]
    %v548 = vld [vmem:[#allocation2 + $0x1c0] sm:$0xff]
    %v549 = vld [vmem:[#allocation2 + $0x1c8] sm:$0xff]
    %v550 = vld [vmem:[#allocation2 + $0x1d0] sm:$0xff]
    %v551 = vld [vmem:[#allocation2 + $0x1d8] sm:$0xff]
    %v552 = vld [vmem:[#allocation2 + $0x1e0] sm:$0xff]
    %v553 = vld [vmem:[#allocation2 + $0x1e8] sm:$0xff]
    %v554 = vld [vmem:[#allocation2 + $0x1f0] sm:$0xff]
    %v555 = vld [vmem:[#allocation2 + $0x1f8] sm:$0xff]
    %v556 = vld [vmem:[#allocation2 + $0x200] sm:$0xff]
    %v557 = vld [vmem:[#allocation2 + $0x208] sm:$0xff]
    %v558 = vld [vmem:[#allocation2 + $0x210] sm:$0xff]
    %v559 = vld [vmem:[#allocation2 + $0x218] sm:$0xff]
    %v560 = vld [vmem:[#allocation2 + $0x220] sm:$0xff]
    %v561 = vld [vmem:[#allocation2 + $0x228] sm:$0xff]
    %v562 = vld [vmem:[#allocation2 + $0x230] sm:$0xff]
    %v563 = vld [vmem:[#allocation2 + $0x238] sm:$0xff]
    %v564 = vld [vmem:[#allocation2 + $0x240] sm:$0xff]
    %v565 = vld [vmem:[#allocation2 + $0x248] sm:$0xff]
    %v566 = vld [vmem:[#allocation2 + $0x250] sm:$0xff]
    %v567 = vld [vmem:[#allocation2 + $0x258] sm:$0xff]
    %v568 = vld [vmem:[#allocation2 + $0x260] sm:$0xff]
    %v569 = vld [vmem:[#allocation2 + $0x268] sm:$0xff]
    %v570 = vld [vmem:[#allocation2 + $0x270] sm:$0xff]
    %v571 = vld [vmem:[#allocation2 + $0x278] sm:$0xff]
    %v572 = vld [vmem:[#allocation2 + $0x280] sm:$0xff]
    %v573 = vld [vmem:[#allocation2 + $0x288] sm:$0xff]
    %v574 = vld [vmem:[#allocation2 + $0x290] sm:$0xff]
    %v575 = vld [vmem:[#allocation2 + $0x298] sm:$0xff]
    %v576 = vld [vmem:[#allocation2 + $0x2a0] sm:$0xff]
    %v577 = vld [vmem:[#allocation2 + $0x2a8] sm:$0xff]
    %v578 = vld [vmem:[#allocation2 + $0x2b0] sm:$0xff]
    %v579 = vld [vmem:[#allocation2 + $0x2b8] sm:$0xff]
    %v580 = vld [vmem:[#allocation2 + $0x2c0] sm:$0xff]
    %v581 = vld [vmem:[#allocation2 + $0x2c8] sm:$0xff]
    %v582 = vld [vmem:[#allocation2 + $0x2d0] sm:$0xff]
    %v583 = vld [vmem:[#allocation2 + $0x2d8] sm:$0xff]
    %v584 = vld [vmem:[#allocation2 + $0x2e0] sm:$0xff]
    %v585 = vld [vmem:[#allocation2 + $0x2e8] sm:$0xff]
    %v586 = vld [vmem:[#allocation2 + $0x2f0] sm:$0xff]
    %v587 = vld [vmem:[#allocation2 + $0x2f8] sm:$0xff]
    %v588 = vld [vmem:[#allocation11] sm:$0xff]
    %v589 = vld [vmem:[#allocation11 + $0x8] sm:$0xf]
    %v592 = vperm.slane %v588, 0
    %v593 = vperm.slane %v588, 1
    %v594 = vperm.slane %v588, 2
    %v595 = vperm.slane %v588, 3
    %v596 = vperm.slane %v588, 4
    %v597 = vperm.slane %v588, 5
    %v598 = vperm.slane %v588, 6
    %v599 = vperm.slane %v588, 7
    %v600 = vperm.slane %v589, 0
    %v601 = vperm.slane %v589, 1
    %v602 = vperm.slane %v589, 2
    %v603 = vperm.slane %v589, 3
    %v712 = vunpack.c.l.b16 %v492
    %v713 = vunpack.c.h.b16 %v492
    %v714 = vunpack.c.l.b16 %v493
    %v715 = vunpack.c.h.b16 %v493
    %v716 = vunpack.c.l.b16 %v494
    %v717 = vunpack.c.h.b16 %v494
    %v718 = vunpack.c.l.b16 %v495
    %v719 = vunpack.c.h.b16 %v495
    %v720 = vunpack.c.l.b16 %v496
    %v721 = vunpack.c.h.b16 %v496
    %v722 = vunpack.c.l.b16 %v497
    %v723 = vunpack.c.h.b16 %v497
    %v724 = vunpack.c.l.b16 %v498
    %v725 = vunpack.c.h.b16 %v498
    %v726 = vunpack.c.l.b16 %v499
    %v727 = vunpack.c.h.b16 %v499
    %v728 = vunpack.c.l.b16 %v500
    %v729 = vunpack.c.h.b16 %v500
    %v730 = vunpack.c.l.b16 %v501
    %v731 = vunpack.c.h.b16 %v501
    %v732 = vunpack.c.l.b16 %v502
    %v733 = vunpack.c.h.b16 %v502
    %v734 = vunpack.c.l.b16 %v503
    %v735 = vunpack.c.h.b16 %v503
    %v736 = vunpack.c.l.b16 %v504
    %v737 = vunpack.c.h.b16 %v504
    %v738 = vunpack.c.l.b16 %v505
    %v739 = vunpack.c.h.b16 %v505
    %v740 = vunpack.c.l.b16 %v506
    %v741 = vunpack.c.h.b16 %v506
    %v742 = vunpack.c.l.b16 %v507
    %v743 = vunpack.c.h.b16 %v507
    %v744 = vunpack.c.l.b16 %v508
    %v745 = vunpack.c.h.b16 %v508
    %v746 = vunpack.c.l.b16 %v509
    %v747 = vunpack.c.h.b16 %v509
    %v748 = vunpack.c.l.b16 %v510
    %v749 = vunpack.c.h.b16 %v510
    %v750 = vunpack.c.l.b16 %v511
    %v751 = vunpack.c.h.b16 %v511
    %v752 = vunpack.c.l.b16 %v512
    %v753 = vunpack.c.h.b16 %v512
    %v754 = vunpack.c.l.b16 %v513
    %v755 = vunpack.c.h.b16 %v513
    %v756 = vunpack.c.l.b16 %v514
    %v757 = vunpack.c.h.b16 %v514
    %v758 = vunpack.c.l.b16 %v515
    %v759 = vunpack.c.h.b16 %v515
    %v760 = vunpack.c.l.b16 %v516
    %v761 = vunpack.c.h.b16 %v516
    %v762 = vunpack.c.l.b16 %v517
    %v763 = vunpack.c.h.b16 %v517
    %v764 = vunpack.c.l.b16 %v518
    %v765 = vunpack.c.h.b16 %v518
    %v766 = vunpack.c.l.b16 %v519
    %v767 = vunpack.c.h.b16 %v519
    %v768 = vunpack.c.l.b16 %v520
    %v769 = vunpack.c.h.b16 %v520
    %v770 = vunpack.c.l.b16 %v521
    %v771 = vunpack.c.h.b16 %v521
    %v772 = vunpack.c.l.b16 %v522
    %v773 = vunpack.c.h.b16 %v522
    %v774 = vunpack.c.l.b16 %v523
    %v775 = vunpack.c.h.b16 %v523
    %v776 = vunpack.c.l.b16 %v524
    %v777 = vunpack.c.h.b16 %v524
    %v778 = vunpack.c.l.b16 %v525
    %v779 = vunpack.c.h.b16 %v525
    %v780 = vunpack.c.l.b16 %v526
    %v781 = vunpack.c.h.b16 %v526
    %v782 = vunpack.c.l.b16 %v527
    %v783 = vunpack.c.h.b16 %v527
    %v784 = vunpack.c.l.b16 %v528
    %v785 = vunpack.c.h.b16 %v528
    %v786 = vunpack.c.l.b16 %v529
    %v787 = vunpack.c.h.b16 %v529
    %v788 = vunpack.c.l.b16 %v530
    %v789 = vunpack.c.h.b16 %v530
    %v790 = vunpack.c.l.b16 %v531
    %v791 = vunpack.c.h.b16 %v531
    %v792 = vunpack.c.l.b16 %v532
    %v793 = vunpack.c.h.b16 %v532
    %v794 = vunpack.c.l.b16 %v533
    %v795 = vunpack.c.h.b16 %v533
    %v796 = vunpack.c.l.b16 %v534
    %v797 = vunpack.c.h.b16 %v534
    %v798 = vunpack.c.l.b16 %v535
    %v799 = vunpack.c.h.b16 %v535
    %v800 = vunpack.c.l.b16 %v536
    %v801 = vunpack.c.h.b16 %v536
    %v802 = vunpack.c.l.b16 %v537
    %v803 = vunpack.c.h.b16 %v537
    %v804 = vunpack.c.l.b16 %v538
    %v805 = vunpack.c.h.b16 %v538
    %v806 = vunpack.c.l.b16 %v539
    %v807 = vunpack.c.h.b16 %v539
    %v808 = vunpack.c.l.b16 %v540
    %v809 = vunpack.c.h.b16 %v540
    %v810 = vunpack.c.l.b16 %v541
    %v811 = vunpack.c.h.b16 %v541
    %v812 = vunpack.c.l.b16 %v542
    %v813 = vunpack.c.h.b16 %v542
    %v814 = vunpack.c.l.b16 %v543
    %v815 = vunpack.c.h.b16 %v543
    %v816 = vunpack.c.l.b16 %v544
    %v817 = vunpack.c.h.b16 %v544
    %v818 = vunpack.c.l.b16 %v545
    %v819 = vunpack.c.h.b16 %v545
    %v820 = vunpack.c.l.b16 %v546
    %v821 = vunpack.c.h.b16 %v546
    %v822 = vunpack.c.l.b16 %v547
    %v823 = vunpack.c.h.b16 %v547
    %v824 = vunpack.c.l.b16 %v548
    %v825 = vunpack.c.h.b16 %v548
    %v826 = vunpack.c.l.b16 %v549
    %v827 = vunpack.c.h.b16 %v549
    %v828 = vunpack.c.l.b16 %v550
    %v829 = vunpack.c.h.b16 %v550
    %v830 = vunpack.c.l.b16 %v551
    %v831 = vunpack.c.h.b16 %v551
    %v832 = vunpack.c.l.b16 %v552
    %v833 = vunpack.c.h.b16 %v552
    %v834 = vunpack.c.l.b16 %v553
    %v835 = vunpack.c.h.b16 %v553
    %v836 = vunpack.c.l.b16 %v554
    %v837 = vunpack.c.h.b16 %v554
    %v838 = vunpack.c.l.b16 %v555
    %v839 = vunpack.c.h.b16 %v555
    %v840 = vunpack.c.l.b16 %v556
    %v841 = vunpack.c.h.b16 %v556
    %v842 = vunpack.c.l.b16 %v557
    %v843 = vunpack.c.h.b16 %v557
    %v844 = vunpack.c.l.b16 %v558
    %v845 = vunpack.c.h.b16 %v558
    %v846 = vunpack.c.l.b16 %v559
    %v847 = vunpack.c.h.b16 %v559
    %v848 = vunpack.c.l.b16 %v560
    %v849 = vunpack.c.h.b16 %v560
    %v850 = vunpack.c.l.b16 %v561
    %v851 = vunpack.c.h.b16 %v561
    %v852 = vunpack.c.l.b16 %v562
    %v853 = vunpack.c.h.b16 %v562
    %v854 = vunpack.c.l.b16 %v563
    %v855 = vunpack.c.h.b16 %v563
    %v856 = vunpack.c.l.b16 %v564
    %v857 = vunpack.c.h.b16 %v564
    %v858 = vunpack.c.l.b16 %v565
    %v859 = vunpack.c.h.b16 %v565
    %v860 = vunpack.c.l.b16 %v566
    %v861 = vunpack.c.h.b16 %v566
    %v862 = vunpack.c.l.b16 %v567
    %v863 = vunpack.c.h.b16 %v567
    %v864 = vunpack.c.l.b16 %v568
    %v865 = vunpack.c.h.b16 %v568
    %v866 = vunpack.c.l.b16 %v569
    %v867 = vunpack.c.h.b16 %v569
    %v868 = vunpack.c.l.b16 %v570
    %v869 = vunpack.c.h.b16 %v570
    %v870 = vunpack.c.l.b16 %v571
    %v871 = vunpack.c.h.b16 %v571
    %v872 = vunpack.c.l.b16 %v572
    %v873 = vunpack.c.h.b16 %v572
    %v874 = vunpack.c.l.b16 %v573
    %v875 = vunpack.c.h.b16 %v573
    %v876 = vunpack.c.l.b16 %v574
    %v877 = vunpack.c.h.b16 %v574
    %v878 = vunpack.c.l.b16 %v575
    %v879 = vunpack.c.h.b16 %v575
    %v880 = vunpack.c.l.b16 %v576
    %v881 = vunpack.c.h.b16 %v576
    %v882 = vunpack.c.l.b16 %v577
    %v883 = vunpack.c.h.b16 %v577
    %v884 = vunpack.c.l.b16 %v578
    %v885 = vunpack.c.h.b16 %v578
    %v886 = vunpack.c.l.b16 %v579
    %v887 = vunpack.c.h.b16 %v579
    %v888 = vunpack.c.l.b16 %v580
    %v889 = vunpack.c.h.b16 %v580
    %v890 = vunpack.c.l.b16 %v581
    %v891 = vunpack.c.h.b16 %v581
    %v892 = vunpack.c.l.b16 %v582
    %v893 = vunpack.c.h.b16 %v582
    %v894 = vunpack.c.l.b16 %v583
    %v895 = vunpack.c.h.b16 %v583
    %v896 = vunpack.c.l.b16 %v584
    %v897 = vunpack.c.h.b16 %v584
    %v898 = vunpack.c.l.b16 %v585
    %v899 = vunpack.c.h.b16 %v585
    %v900 = vunpack.c.l.b16 %v586
    %v901 = vunpack.c.h.b16 %v586
    %v902 = vunpack.c.l.b16 %v587
    %v903 = vunpack.c.h.b16 %v587
    %v904 = vpack.c.b16 %v724, %v712
    %v905 = vpack.c.b16 %v725, %v713
    %v906 = vpack.c.b16 %v726, %v714
    %v907 = vpack.c.b16 %v727, %v715
    %v908 = vpack.c.b16 %v728, %v716
    %v909 = vpack.c.b16 %v729, %v717
    %v910 = vpack.c.b16 %v730, %v718
    %v911 = vpack.c.b16 %v731, %v719
    %v912 = vpack.c.b16 %v732, %v720
    %v913 = vpack.c.b16 %v733, %v721
    %v914 = vpack.c.b16 %v734, %v722
    %v915 = vpack.c.b16 %v735, %v723
    %v916 = vpack.c.b16 %v748, %v736
    %v917 = vpack.c.b16 %v749, %v737
    %v918 = vpack.c.b16 %v750, %v738
    %v919 = vpack.c.b16 %v751, %v739
    %v920 = vpack.c.b16 %v752, %v740
    %v921 = vpack.c.b16 %v753, %v741
    %v922 = vpack.c.b16 %v754, %v742
    %v923 = vpack.c.b16 %v755, %v743
    %v924 = vpack.c.b16 %v756, %v744
    %v925 = vpack.c.b16 %v757, %v745
    %v926 = vpack.c.b16 %v758, %v746
    %v927 = vpack.c.b16 %v759, %v747
    %v928 = vpack.c.b16 %v772, %v760
    %v929 = vpack.c.b16 %v773, %v761
    %v930 = vpack.c.b16 %v774, %v762
    %v931 = vpack.c.b16 %v775, %v763
    %v932 = vpack.c.b16 %v776, %v764
    %v933 = vpack.c.b16 %v777, %v765
    %v934 = vpack.c.b16 %v778, %v766
    %v935 = vpack.c.b16 %v779, %v767
    %v936 = vpack.c.b16 %v780, %v768
    %v937 = vpack.c.b16 %v781, %v769
    %v938 = vpack.c.b16 %v782, %v770
    %v939 = vpack.c.b16 %v783, %v771
    %v940 = vpack.c.b16 %v796, %v784
    %v941 = vpack.c.b16 %v797, %v785
    %v942 = vpack.c.b16 %v798, %v786
    %v943 = vpack.c.b16 %v799, %v787
    %v944 = vpack.c.b16 %v800, %v788
    %v945 = vpack.c.b16 %v801, %v789
    %v946 = vpack.c.b16 %v802, %v790
    %v947 = vpack.c.b16 %v803, %v791
    %v948 = vpack.c.b16 %v804, %v792
    %v949 = vpack.c.b16 %v805, %v793
    %v950 = vpack.c.b16 %v806, %v794
    %v951 = vpack.c.b16 %v807, %v795
    %v952 = vpack.c.b16 %v820, %v808
    %v953 = vpack.c.b16 %v821, %v809
    %v954 = vpack.c.b16 %v822, %v810
    %v955 = vpack.c.b16 %v823, %v811
    %v956 = vpack.c.b16 %v824, %v812
    %v957 = vpack.c.b16 %v825, %v813
    %v958 = vpack.c.b16 %v826, %v814
    %v959 = vpack.c.b16 %v827, %v815
    %v960 = vpack.c.b16 %v828, %v816
    %v961 = vpack.c.b16 %v829, %v817
    %v962 = vpack.c.b16 %v830, %v818
    %v963 = vpack.c.b16 %v831, %v819
    %v964 = vpack.c.b16 %v844, %v832
    %v965 = vpack.c.b16 %v845, %v833
    %v966 = vpack.c.b16 %v846, %v834
    %v967 = vpack.c.b16 %v847, %v835
    %v968 = vpack.c.b16 %v848, %v836
    %v969 = vpack.c.b16 %v849, %v837
    %v970 = vpack.c.b16 %v850, %v838
    %v971 = vpack.c.b16 %v851, %v839
    %v972 = vpack.c.b16 %v852, %v840
    %v973 = vpack.c.b16 %v853, %v841
    %v974 = vpack.c.b16 %v854, %v842
    %v975 = vpack.c.b16 %v855, %v843
    %v976 = vpack.c.b16 %v868, %v856
    %v977 = vpack.c.b16 %v869, %v857
    %v978 = vpack.c.b16 %v870, %v858
    %v979 = vpack.c.b16 %v871, %v859
    %v980 = vpack.c.b16 %v872, %v860
    %v981 = vpack.c.b16 %v873, %v861
    %v982 = vpack.c.b16 %v874, %v862
    %v983 = vpack.c.b16 %v875, %v863
    %v984 = vpack.c.b16 %v876, %v864
    %v985 = vpack.c.b16 %v877, %v865
    %v986 = vpack.c.b16 %v878, %v866
    %v987 = vpack.c.b16 %v879, %v867
    %v988 = vpack.c.b16 %v892, %v880
    %v989 = vpack.c.b16 %v893, %v881
    %v990 = vpack.c.b16 %v894, %v882
    %v991 = vpack.c.b16 %v895, %v883
    %v992 = vpack.c.b16 %v896, %v884
    %v993 = vpack.c.b16 %v897, %v885
    %v994 = vpack.c.b16 %v898, %v886
    %v995 = vpack.c.b16 %v899, %v887
    %v996 = vpack.c.b16 %v900, %v888
    %v997 = vpack.c.b16 %v901, %v889
    %v998 = vpack.c.b16 %v902, %v890
    %v999 = vpack.c.b16 %v903, %v891
    %1096 = vmatpush.bf16.msra.mxu0 %v988
    %1097 = vmatpush.bf16.msra.mxu0 %v976
    %1098 = vmatpush.bf16.msra.mxu0 %v964
    %1099 = vmatpush.bf16.msra.mxu0 %v952
    %1100 = vmatpush.bf16.msra.mxu0 %v940
    %1101 = vmatpush.bf16.msra.mxu0 %v928
    %1102 = vmatpush.bf16.msra.mxu0 %v916
    %1103 = vmatpush.bf16.msra.mxu0 %v904
    %1104 = vmatmul.bf16.gmra.mxu0 %v491
    %v1105 = vpop.f32.mrf.mxu0
    %v1106 = vadd.f32 %v592, %v1105
    %v1107 = vpop.f32.mrf.mxu0
    %1108 = vdwg.mxu0
    %1109 = vmatpush.bf16.msra.mxu0 %v989
    %1110 = vmatpush.bf16.msra.mxu0 %v977
    %1111 = vmatpush.bf16.msra.mxu0 %v965
    %1112 = vmatpush.bf16.msra.mxu0 %v953
    %1113 = vmatpush.bf16.msra.mxu0 %v941
    %1114 = vmatpush.bf16.msra.mxu0 %v929
    %1115 = vmatpush.bf16.msra.mxu0 %v917
    %1116 = vmatpush.bf16.msra.mxu0 %v905
    %1117 = vmatmul.bf16.gmra.mxu0 %v491
    %v1118 = vpop.f32.mrf.mxu0
    %v1119 = vadd.f32 %v593, %v1118
    %v1120 = vpop.f32.mrf.mxu0
    %1121 = vdwg.mxu0
    %1122 = vmatpush.bf16.msra.mxu0 %v990
    %1123 = vmatpush.bf16.msra.mxu0 %v978
    %1124 = vmatpush.bf16.msra.mxu0 %v966
    %1125 = vmatpush.bf16.msra.mxu0 %v954
    %1126 = vmatpush.bf16.msra.mxu0 %v942
    %1127 = vmatpush.bf16.msra.mxu0 %v930
    %1128 = vmatpush.bf16.msra.mxu0 %v918
    %1129 = vmatpush.bf16.msra.mxu0 %v906
    %1130 = vmatmul.bf16.gmra.mxu0 %v491
    %v1131 = vpop.f32.mrf.mxu0
    %v1132 = vadd.f32 %v594, %v1131
    %v1133 = vpop.f32.mrf.mxu0
    %1134 = vdwg.mxu0
    %1135 = vmatpush.bf16.msra.mxu0 %v991
    %1136 = vmatpush.bf16.msra.mxu0 %v979
    %1137 = vmatpush.bf16.msra.mxu0 %v967
    %1138 = vmatpush.bf16.msra.mxu0 %v955
    %1139 = vmatpush.bf16.msra.mxu0 %v943
    %1140 = vmatpush.bf16.msra.mxu0 %v931
    %1141 = vmatpush.bf16.msra.mxu0 %v919
    %1142 = vmatpush.bf16.msra.mxu0 %v907
    %1143 = vmatmul.bf16.gmra.mxu0 %v491
    %v1144 = vpop.f32.mrf.mxu0
    %v1145 = vadd.f32 %v595, %v1144
    %v1146 = vpop.f32.mrf.mxu0
    %1147 = vdwg.mxu0
    %1148 = vmatpush.bf16.msra.mxu0 %v992
    %1149 = vmatpush.bf16.msra.mxu0 %v980
    %1150 = vmatpush.bf16.msra.mxu0 %v968
    %1151 = vmatpush.bf16.msra.mxu0 %v956
    %1152 = vmatpush.bf16.msra.mxu0 %v944
    %1153 = vmatpush.bf16.msra.mxu0 %v932
    %1154 = vmatpush.bf16.msra.mxu0 %v920
    %1155 = vmatpush.bf16.msra.mxu0 %v908
    %1156 = vmatmul.bf16.gmra.mxu0 %v491
    %v1157 = vpop.f32.mrf.mxu0
    %v1158 = vadd.f32 %v596, %v1157
    %v1159 = vpop.f32.mrf.mxu0
    %1160 = vdwg.mxu0
    %1161 = vmatpush.bf16.msra.mxu0 %v993
    %1162 = vmatpush.bf16.msra.mxu0 %v981
    %1163 = vmatpush.bf16.msra.mxu0 %v969
    %1164 = vmatpush.bf16.msra.mxu0 %v957
    %1165 = vmatpush.bf16.msra.mxu0 %v945
    %1166 = vmatpush.bf16.msra.mxu0 %v933
    %1167 = vmatpush.bf16.msra.mxu0 %v921
    %1168 = vmatpush.bf16.msra.mxu0 %v909
    %1169 = vmatmul.bf16.gmra.mxu0 %v491
    %v1170 = vpop.f32.mrf.mxu0
    %v1171 = vadd.f32 %v597, %v1170
    %v1172 = vpop.f32.mrf.mxu0
    %1173 = vdwg.mxu0
    %1174 = vmatpush.bf16.msra.mxu0 %v994
    %1175 = vmatpush.bf16.msra.mxu0 %v982
    %1176 = vmatpush.bf16.msra.mxu0 %v970
    %1177 = vmatpush.bf16.msra.mxu0 %v958
    %1178 = vmatpush.bf16.msra.mxu0 %v946
    %1179 = vmatpush.bf16.msra.mxu0 %v934
    %1180 = vmatpush.bf16.msra.mxu0 %v922
    %1181 = vmatpush.bf16.msra.mxu0 %v910
    %1182 = vmatmul.bf16.gmra.mxu0 %v491
    %v1183 = vpop.f32.mrf.mxu0
    %v1184 = vadd.f32 %v598, %v1183
    %v1185 = vpop.f32.mrf.mxu0
    %1186 = vdwg.mxu0
    %1187 = vmatpush.bf16.msra.mxu0 %v995
    %1188 = vmatpush.bf16.msra.mxu0 %v983
    %1189 = vmatpush.bf16.msra.mxu0 %v971
    %1190 = vmatpush.bf16.msra.mxu0 %v959
    %1191 = vmatpush.bf16.msra.mxu0 %v947
    %1192 = vmatpush.bf16.msra.mxu0 %v935
    %1193 = vmatpush.bf16.msra.mxu0 %v923
    %1194 = vmatpush.bf16.msra.mxu0 %v911
    %1195 = vmatmul.bf16.gmra.mxu0 %v491
    %v1196 = vpop.f32.mrf.mxu0
    %v1197 = vadd.f32 %v599, %v1196
    %v1198 = vpop.f32.mrf.mxu0
    %1199 = vdwg.mxu0
    %1200 = vmatpush.bf16.msra.mxu0 %v996
    %1201 = vmatpush.bf16.msra.mxu0 %v984
    %1202 = vmatpush.bf16.msra.mxu0 %v972
    %1203 = vmatpush.bf16.msra.mxu0 %v960
    %1204 = vmatpush.bf16.msra.mxu0 %v948
    %1205 = vmatpush.bf16.msra.mxu0 %v936
    %1206 = vmatpush.bf16.msra.mxu0 %v924
    %1207 = vmatpush.bf16.msra.mxu0 %v912
    %1208 = vmatmul.bf16.gmra.mxu0 %v491
    %v1209 = vpop.f32.mrf.mxu0
    %v1210 = vadd.f32 %v600, %v1209
    %v1211 = vpop.f32.mrf.mxu0
    %1212 = vdwg.mxu0
    %1213 = vmatpush.bf16.msra.mxu0 %v997
    %1214 = vmatpush.bf16.msra.mxu0 %v985
    %1215 = vmatpush.bf16.msra.mxu0 %v973
    %1216 = vmatpush.bf16.msra.mxu0 %v961
    %1217 = vmatpush.bf16.msra.mxu0 %v949
    %1218 = vmatpush.bf16.msra.mxu0 %v937
    %1219 = vmatpush.bf16.msra.mxu0 %v925
    %1220 = vmatpush.bf16.msra.mxu0 %v913
    %1221 = vmatmul.bf16.gmra.mxu0 %v491
    %v1222 = vpop.f32.mrf.mxu0
    %v1223 = vadd.f32 %v601, %v1222
    %v1224 = vpop.f32.mrf.mxu0
    %1225 = vdwg.mxu0
    %1226 = vmatpush.bf16.msra.mxu0 %v998
    %1227 = vmatpush.bf16.msra.mxu0 %v986
    %1228 = vmatpush.bf16.msra.mxu0 %v974
    %1229 = vmatpush.bf16.msra.mxu0 %v962
    %1230 = vmatpush.bf16.msra.mxu0 %v950
    %1231 = vmatpush.bf16.msra.mxu0 %v938
    %1232 = vmatpush.bf16.msra.mxu0 %v926
    %1233 = vmatpush.bf16.msra.mxu0 %v914
    %1234 = vmatmul.bf16.gmra.mxu0 %v491
    %v1235 = vpop.f32.mrf.mxu0
    %v1236 = vadd.f32 %v602, %v1235
    %v1237 = vpop.f32.mrf.mxu0
    %1238 = vdwg.mxu0
    %1239 = vmatpush.bf16.msra.mxu0 %v999
    %1240 = vmatpush.bf16.msra.mxu0 %v987
    %1241 = vmatpush.bf16.msra.mxu0 %v975
    %1242 = vmatpush.bf16.msra.mxu0 %v963
    %1243 = vmatpush.bf16.msra.mxu0 %v951
    %1244 = vmatpush.bf16.msra.mxu0 %v939
    %1245 = vmatpush.bf16.msra.mxu0 %v927
    %1246 = vmatpush.bf16.msra.mxu0 %v915
    %1247 = vmatmul.bf16.gmra.mxu0 %v491
    %v1248 = vpop.f32.mrf.mxu0
    %v1249 = vadd.f32 %v603, %v1248
    %v1250 = vpop.f32.mrf.mxu0
    %1251 = vdwg.mxu0
    %1252 = vst [vmem:[#allocation13] sm:$0xff] %v1106
    %1253 = vst [vmem:[#allocation13 + $0x8] sm:$0xff] %v1119
    %1254 = vst [vmem:[#allocation13 + $0x10] sm:$0xff] %v1132
    %1255 = vst [vmem:[#allocation13 + $0x18] sm:$0xff] %v1145
    %1256 = vst [vmem:[#allocation13 + $0x20] sm:$0xff] %v1158
    %1257 = vst [vmem:[#allocation13 + $0x28] sm:$0xff] %v1171
    %1258 = vst [vmem:[#allocation14] sm:$0xff] %v1184
    %1259 = vst [vmem:[#allocation14 + $0x8] sm:$0xff] %v1197
    %1260 = vst [vmem:[#allocation14 + $0x10] sm:$0xff] %v1210
    %1261 = vst [vmem:[#allocation14 + $0x18] sm:$0xff] %v1223
    %1262 = vst [vmem:[#allocation14 + $0x20] sm:$0xff] %v1236
    %1263 = vst [vmem:[#allocation14 + $0x28] sm:$0xff] %v1249
    %s1264 = smul.u32 4, 96
    %s1265 = smul.u32 %s1264, 2
    %s1266 = sshll.u32 %s1265, 4
    %1267 = dma.done %s99, %s1266
    %v1268 = vpack.c.bf16 %v1106, %v1106
    %v1269 = vpack.c.bf16 %v1119, %v1119
    %v1270 = vpack.c.bf16 %v1132, %v1132
    %v1271 = vpack.c.bf16 %v1145, %v1145
    %v1272 = vpack.c.bf16 %v1158, %v1158
    %v1273 = vpack.c.bf16 %v1171, %v1171
    %v1274 = vld [vmem:[#allocation3] sm:$0xff]
    %v1275 = vld [vmem:[#allocation3 + $0x8] sm:$0xff]
    %v1276 = vld [vmem:[#allocation3 + $0x10] sm:$0xff]
    %v1277 = vld [vmem:[#allocation3 + $0x18] sm:$0xff]
    %v1278 = vld [vmem:[#allocation3 + $0x20] sm:$0xff]
    %v1279 = vld [vmem:[#allocation3 + $0x28] sm:$0xff]
    %v1280 = vld [vmem:[#allocation3 + $0x30] sm:$0xff]
    %v1281 = vld [vmem:[#allocation3 + $0x38] sm:$0xff]
    %v1282 = vld [vmem:[#allocation3 + $0x40] sm:$0xff]
    %v1283 = vld [vmem:[#allocation3 + $0x48] sm:$0xff]
    %v1284 = vld [vmem:[#allocation3 + $0x50] sm:$0xff]
    %v1285 = vld [vmem:[#allocation3 + $0x58] sm:$0xff]
    %v1286 = vld [vmem:[#allocation3 + $0x60] sm:$0xff]
    %v1287 = vld [vmem:[#allocation3 + $0x68] sm:$0xff]
    %v1288 = vld [vmem:[#allocation3 + $0x70] sm:$0xff]
    %v1289 = vld [vmem:[#allocation3 + $0x78] sm:$0xff]
    %v1290 = vld [vmem:[#allocation3 + $0x80] sm:$0xff]
    %v1291 = vld [vmem:[#allocation3 + $0x88] sm:$0xff]
    %v1292 = vld [vmem:[#allocation3 + $0x90] sm:$0xff]
    %v1293 = vld [vmem:[#allocation3 + $0x98] sm:$0xff]
    %v1294 = vld [vmem:[#allocation3 + $0xa0] sm:$0xff]
    %v1295 = vld [vmem:[#allocation3 + $0xa8] sm:$0xff]
    %v1296 = vld [vmem:[#allocation3 + $0xb0] sm:$0xff]
    %v1297 = vld [vmem:[#allocation3 + $0xb8] sm:$0xff]
    %v1298 = vld [vmem:[#allocation3 + $0xc0] sm:$0xff]
    %v1299 = vld [vmem:[#allocation3 + $0xc8] sm:$0xff]
    %v1300 = vld [vmem:[#allocation3 + $0xd0] sm:$0xff]
    %v1301 = vld [vmem:[#allocation3 + $0xd8] sm:$0xff]
    %v1302 = vld [vmem:[#allocation3 + $0xe0] sm:$0xff]
    %v1303 = vld [vmem:[#allocation3 + $0xe8] sm:$0xff]
    %v1304 = vld [vmem:[#allocation3 + $0xf0] sm:$0xff]
    %v1305 = vld [vmem:[#allocation3 + $0xf8] sm:$0xff]
    %v1306 = vld [vmem:[#allocation3 + $0x100] sm:$0xff]
    %v1307 = vld [vmem:[#allocation3 + $0x108] sm:$0xff]
    %v1308 = vld [vmem:[#allocation3 + $0x110] sm:$0xff]
    %v1309 = vld [vmem:[#allocation3 + $0x118] sm:$0xff]
    %v1310 = vld [vmem:[#allocation3 + $0x120] sm:$0xff]
    %v1311 = vld [vmem:[#allocation3 + $0x128] sm:$0xff]
    %v1312 = vld [vmem:[#allocation3 + $0x130] sm:$0xff]
    %v1313 = vld [vmem:[#allocation3 + $0x138] sm:$0xff]
    %v1314 = vld [vmem:[#allocation3 + $0x140] sm:$0xff]
    %v1315 = vld [vmem:[#allocation3 + $0x148] sm:$0xff]
    %v1316 = vld [vmem:[#allocation3 + $0x150] sm:$0xff]
    %v1317 = vld [vmem:[#allocation3 + $0x158] sm:$0xff]
    %v1318 = vld [vmem:[#allocation3 + $0x160] sm:$0xff]
    %v1319 = vld [vmem:[#allocation3 + $0x168] sm:$0xff]
    %v1320 = vld [vmem:[#allocation3 + $0x170] sm:$0xff]
    %v1321 = vld [vmem:[#allocation3 + $0x178] sm:$0xff]
    %v1322 = vld [vmem:[#allocation3 + $0x180] sm:$0xff]
    %v1323 = vld [vmem:[#allocation3 + $0x188] sm:$0xff]
    %v1324 = vld [vmem:[#allocation3 + $0x190] sm:$0xff]
    %v1325 = vld [vmem:[#allocation3 + $0x198] sm:$0xff]
    %v1326 = vld [vmem:[#allocation3 + $0x1a0] sm:$0xff]
    %v1327 = vld [vmem:[#allocation3 + $0x1a8] sm:$0xff]
    %v1328 = vld [vmem:[#allocation3 + $0x1b0] sm:$0xff]
    %v1329 = vld [vmem:[#allocation3 + $0x1b8] sm:$0xff]
    %v1330 = vld [vmem:[#allocation3 + $0x1c0] sm:$0xff]
    %v1331 = vld [vmem:[#allocation3 + $0x1c8] sm:$0xff]
    %v1332 = vld [vmem:[#allocation3 + $0x1d0] sm:$0xff]
    %v1333 = vld [vmem:[#allocation3 + $0x1d8] sm:$0xff]
    %v1334 = vld [vmem:[#allocation3 + $0x1e0] sm:$0xff]
    %v1335 = vld [vmem:[#allocation3 + $0x1e8] sm:$0xff]
    %v1336 = vld [vmem:[#allocation3 + $0x1f0] sm:$0xff]
    %v1337 = vld [vmem:[#allocation3 + $0x1f8] sm:$0xff]
    %v1338 = vld [vmem:[#allocation3 + $0x200] sm:$0xff]
    %v1339 = vld [vmem:[#allocation3 + $0x208] sm:$0xff]
    %v1340 = vld [vmem:[#allocation3 + $0x210] sm:$0xff]
    %v1341 = vld [vmem:[#allocation3 + $0x218] sm:$0xff]
    %v1342 = vld [vmem:[#allocation3 + $0x220] sm:$0xff]
    %v1343 = vld [vmem:[#allocation3 + $0x228] sm:$0xff]
    %v1344 = vld [vmem:[#allocation3 + $0x230] sm:$0xff]
    %v1345 = vld [vmem:[#allocation3 + $0x238] sm:$0xff]
    %v1346 = vld [vmem:[#allocation3 + $0x240] sm:$0xff]
    %v1347 = vld [vmem:[#allocation3 + $0x248] sm:$0xff]
    %v1348 = vld [vmem:[#allocation3 + $0x250] sm:$0xff]
    %v1349 = vld [vmem:[#allocation3 + $0x258] sm:$0xff]
    %v1350 = vld [vmem:[#allocation3 + $0x260] sm:$0xff]
    %v1351 = vld [vmem:[#allocation3 + $0x268] sm:$0xff]
    %v1352 = vld [vmem:[#allocation3 + $0x270] sm:$0xff]
    %v1353 = vld [vmem:[#allocation3 + $0x278] sm:$0xff]
    %v1354 = vld [vmem:[#allocation3 + $0x280] sm:$0xff]
    %v1355 = vld [vmem:[#allocation3 + $0x288] sm:$0xff]
    %v1356 = vld [vmem:[#allocation3 + $0x290] sm:$0xff]
    %v1357 = vld [vmem:[#allocation3 + $0x298] sm:$0xff]
    %v1358 = vld [vmem:[#allocation3 + $0x2a0] sm:$0xff]
    %v1359 = vld [vmem:[#allocation3 + $0x2a8] sm:$0xff]
    %v1360 = vld [vmem:[#allocation3 + $0x2b0] sm:$0xff]
    %v1361 = vld [vmem:[#allocation3 + $0x2b8] sm:$0xff]
    %v1362 = vld [vmem:[#allocation3 + $0x2c0] sm:$0xff]
    %v1363 = vld [vmem:[#allocation3 + $0x2c8] sm:$0xff]
    %v1364 = vld [vmem:[#allocation3 + $0x2d0] sm:$0xff]
    %v1365 = vld [vmem:[#allocation3 + $0x2d8] sm:$0xff]
    %v1366 = vld [vmem:[#allocation3 + $0x2e0] sm:$0xff]
    %v1367 = vld [vmem:[#allocation3 + $0x2e8] sm:$0xff]
    %v1368 = vld [vmem:[#allocation3 + $0x2f0] sm:$0xff]
    %v1369 = vld [vmem:[#allocation3 + $0x2f8] sm:$0xff]
    %v1466 = vunpack.c.l.b16 %v1274
    %v1467 = vunpack.c.h.b16 %v1274
    %v1468 = vunpack.c.l.b16 %v1275
    %v1469 = vunpack.c.h.b16 %v1275
    %v1470 = vunpack.c.l.b16 %v1276
    %v1471 = vunpack.c.h.b16 %v1276
    %v1472 = vunpack.c.l.b16 %v1277
    %v1473 = vunpack.c.h.b16 %v1277
    %v1474 = vunpack.c.l.b16 %v1278
    %v1475 = vunpack.c.h.b16 %v1278
    %v1476 = vunpack.c.l.b16 %v1279
    %v1477 = vunpack.c.h.b16 %v1279
    %v1478 = vunpack.c.l.b16 %v1280
    %v1479 = vunpack.c.h.b16 %v1280
    %v1480 = vunpack.c.l.b16 %v1281
    %v1481 = vunpack.c.h.b16 %v1281
    %v1482 = vunpack.c.l.b16 %v1282
    %v1483 = vunpack.c.h.b16 %v1282
    %v1484 = vunpack.c.l.b16 %v1283
    %v1485 = vunpack.c.h.b16 %v1283
    %v1486 = vunpack.c.l.b16 %v1284
    %v1487 = vunpack.c.h.b16 %v1284
    %v1488 = vunpack.c.l.b16 %v1285
    %v1489 = vunpack.c.h.b16 %v1285
    %v1490 = vunpack.c.l.b16 %v1286
    %v1491 = vunpack.c.h.b16 %v1286
    %v1492 = vunpack.c.l.b16 %v1287
    %v1493 = vunpack.c.h.b16 %v1287
    %v1494 = vunpack.c.l.b16 %v1288
    %v1495 = vunpack.c.h.b16 %v1288
    %v1496 = vunpack.c.l.b16 %v1289
    %v1497 = vunpack.c.h.b16 %v1289
    %v1498 = vunpack.c.l.b16 %v1290
    %v1499 = vunpack.c.h.b16 %v1290
    %v1500 = vunpack.c.l.b16 %v1291
    %v1501 = vunpack.c.h.b16 %v1291
    %v1502 = vunpack.c.l.b16 %v1292
    %v1503 = vunpack.c.h.b16 %v1292
    %v1504 = vunpack.c.l.b16 %v1293
    %v1505 = vunpack.c.h.b16 %v1293
    %v1506 = vunpack.c.l.b16 %v1294
    %v1507 = vunpack.c.h.b16 %v1294
    %v1508 = vunpack.c.l.b16 %v1295
    %v1509 = vunpack.c.h.b16 %v1295
    %v1510 = vunpack.c.l.b16 %v1296
    %v1511 = vunpack.c.h.b16 %v1296
    %v1512 = vunpack.c.l.b16 %v1297
    %v1513 = vunpack.c.h.b16 %v1297
    %v1514 = vunpack.c.l.b16 %v1298
    %v1515 = vunpack.c.h.b16 %v1298
    %v1516 = vunpack.c.l.b16 %v1299
    %v1517 = vunpack.c.h.b16 %v1299
    %v1518 = vunpack.c.l.b16 %v1300
    %v1519 = vunpack.c.h.b16 %v1300
    %v1520 = vunpack.c.l.b16 %v1301
    %v1521 = vunpack.c.h.b16 %v1301
    %v1522 = vunpack.c.l.b16 %v1302
    %v1523 = vunpack.c.h.b16 %v1302
    %v1524 = vunpack.c.l.b16 %v1303
    %v1525 = vunpack.c.h.b16 %v1303
    %v1526 = vunpack.c.l.b16 %v1304
    %v1527 = vunpack.c.h.b16 %v1304
    %v1528 = vunpack.c.l.b16 %v1305
    %v1529 = vunpack.c.h.b16 %v1305
    %v1530 = vunpack.c.l.b16 %v1306
    %v1531 = vunpack.c.h.b16 %v1306
    %v1532 = vunpack.c.l.b16 %v1307
    %v1533 = vunpack.c.h.b16 %v1307
    %v1534 = vunpack.c.l.b16 %v1308
    %v1535 = vunpack.c.h.b16 %v1308
    %v1536 = vunpack.c.l.b16 %v1309
    %v1537 = vunpack.c.h.b16 %v1309
    %v1538 = vunpack.c.l.b16 %v1310
    %v1539 = vunpack.c.h.b16 %v1310
    %v1540 = vunpack.c.l.b16 %v1311
    %v1541 = vunpack.c.h.b16 %v1311
    %v1542 = vunpack.c.l.b16 %v1312
    %v1543 = vunpack.c.h.b16 %v1312
    %v1544 = vunpack.c.l.b16 %v1313
    %v1545 = vunpack.c.h.b16 %v1313
    %v1546 = vunpack.c.l.b16 %v1314
    %v1547 = vunpack.c.h.b16 %v1314
    %v1548 = vunpack.c.l.b16 %v1315
    %v1549 = vunpack.c.h.b16 %v1315
    %v1550 = vunpack.c.l.b16 %v1316
    %v1551 = vunpack.c.h.b16 %v1316
    %v1552 = vunpack.c.l.b16 %v1317
    %v1553 = vunpack.c.h.b16 %v1317
    %v1554 = vunpack.c.l.b16 %v1318
    %v1555 = vunpack.c.h.b16 %v1318
    %v1556 = vunpack.c.l.b16 %v1319
    %v1557 = vunpack.c.h.b16 %v1319
    %v1558 = vunpack.c.l.b16 %v1320
    %v1559 = vunpack.c.h.b16 %v1320
    %v1560 = vunpack.c.l.b16 %v1321
    %v1561 = vunpack.c.h.b16 %v1321
    %v1562 = vunpack.c.l.b16 %v1322
    %v1563 = vunpack.c.h.b16 %v1322
    %v1564 = vunpack.c.l.b16 %v1323
    %v1565 = vunpack.c.h.b16 %v1323
    %v1566 = vunpack.c.l.b16 %v1324
    %v1567 = vunpack.c.h.b16 %v1324
    %v1568 = vunpack.c.l.b16 %v1325
    %v1569 = vunpack.c.h.b16 %v1325
    %v1570 = vunpack.c.l.b16 %v1326
    %v1571 = vunpack.c.h.b16 %v1326
    %v1572 = vunpack.c.l.b16 %v1327
    %v1573 = vunpack.c.h.b16 %v1327
    %v1574 = vunpack.c.l.b16 %v1328
    %v1575 = vunpack.c.h.b16 %v1328
    %v1576 = vunpack.c.l.b16 %v1329
    %v1577 = vunpack.c.h.b16 %v1329
    %v1578 = vunpack.c.l.b16 %v1330
    %v1579 = vunpack.c.h.b16 %v1330
    %v1580 = vunpack.c.l.b16 %v1331
    %v1581 = vunpack.c.h.b16 %v1331
    %v1582 = vunpack.c.l.b16 %v1332
    %v1583 = vunpack.c.h.b16 %v1332
    %v1584 = vunpack.c.l.b16 %v1333
    %v1585 = vunpack.c.h.b16 %v1333
    %v1586 = vunpack.c.l.b16 %v1334
    %v1587 = vunpack.c.h.b16 %v1334
    %v1588 = vunpack.c.l.b16 %v1335
    %v1589 = vunpack.c.h.b16 %v1335
    %v1590 = vunpack.c.l.b16 %v1336
    %v1591 = vunpack.c.h.b16 %v1336
    %v1592 = vunpack.c.l.b16 %v1337
    %v1593 = vunpack.c.h.b16 %v1337
    %v1594 = vunpack.c.l.b16 %v1338
    %v1595 = vunpack.c.h.b16 %v1338
    %v1596 = vunpack.c.l.b16 %v1339
    %v1597 = vunpack.c.h.b16 %v1339
    %v1598 = vunpack.c.l.b16 %v1340
    %v1599 = vunpack.c.h.b16 %v1340
    %v1600 = vunpack.c.l.b16 %v1341
    %v1601 = vunpack.c.h.b16 %v1341
    %v1602 = vunpack.c.l.b16 %v1342
    %v1603 = vunpack.c.h.b16 %v1342
    %v1604 = vunpack.c.l.b16 %v1343
    %v1605 = vunpack.c.h.b16 %v1343
    %v1606 = vunpack.c.l.b16 %v1344
    %v1607 = vunpack.c.h.b16 %v1344
    %v1608 = vunpack.c.l.b16 %v1345
    %v1609 = vunpack.c.h.b16 %v1345
    %v1610 = vunpack.c.l.b16 %v1346
    %v1611 = vunpack.c.h.b16 %v1346
    %v1612 = vunpack.c.l.b16 %v1347
    %v1613 = vunpack.c.h.b16 %v1347
    %v1614 = vunpack.c.l.b16 %v1348
    %v1615 = vunpack.c.h.b16 %v1348
    %v1616 = vunpack.c.l.b16 %v1349
    %v1617 = vunpack.c.h.b16 %v1349
    %v1618 = vunpack.c.l.b16 %v1350
    %v1619 = vunpack.c.h.b16 %v1350
    %v1620 = vunpack.c.l.b16 %v1351
    %v1621 = vunpack.c.h.b16 %v1351
    %v1622 = vunpack.c.l.b16 %v1352
    %v1623 = vunpack.c.h.b16 %v1352
    %v1624 = vunpack.c.l.b16 %v1353
    %v1625 = vunpack.c.h.b16 %v1353
    %v1626 = vunpack.c.l.b16 %v1354
    %v1627 = vunpack.c.h.b16 %v1354
    %v1628 = vunpack.c.l.b16 %v1355
    %v1629 = vunpack.c.h.b16 %v1355
    %v1630 = vunpack.c.l.b16 %v1356
    %v1631 = vunpack.c.h.b16 %v1356
    %v1632 = vunpack.c.l.b16 %v1357
    %v1633 = vunpack.c.h.b16 %v1357
    %v1634 = vunpack.c.l.b16 %v1358
    %v1635 = vunpack.c.h.b16 %v1358
    %v1636 = vunpack.c.l.b16 %v1359
    %v1637 = vunpack.c.h.b16 %v1359
    %v1638 = vunpack.c.l.b16 %v1360
    %v1639 = vunpack.c.h.b16 %v1360
    %v1640 = vunpack.c.l.b16 %v1361
    %v1641 = vunpack.c.h.b16 %v1361
    %v1642 = vunpack.c.l.b16 %v1362
    %v1643 = vunpack.c.h.b16 %v1362
    %v1644 = vunpack.c.l.b16 %v1363
    %v1645 = vunpack.c.h.b16 %v1363
    %v1646 = vunpack.c.l.b16 %v1364
    %v1647 = vunpack.c.h.b16 %v1364
    %v1648 = vunpack.c.l.b16 %v1365
    %v1649 = vunpack.c.h.b16 %v1365
    %v1650 = vunpack.c.l.b16 %v1366
    %v1651 = vunpack.c.h.b16 %v1366
    %v1652 = vunpack.c.l.b16 %v1367
    %v1653 = vunpack.c.h.b16 %v1367
    %v1654 = vunpack.c.l.b16 %v1368
    %v1655 = vunpack.c.h.b16 %v1368
    %v1656 = vunpack.c.l.b16 %v1369
    %v1657 = vunpack.c.h.b16 %v1369
    %v1658 = vpack.c.b16 %v1468, %v1466
    %v1659 = vpack.c.b16 %v1469, %v1467
    %v1660 = vpack.c.b16 %v1472, %v1470
    %v1661 = vpack.c.b16 %v1473, %v1471
    %v1662 = vpack.c.b16 %v1476, %v1474
    %v1663 = vpack.c.b16 %v1477, %v1475
    %v1664 = vpack.c.b16 %v1480, %v1478
    %v1665 = vpack.c.b16 %v1481, %v1479
    %v1666 = vpack.c.b16 %v1484, %v1482
    %v1667 = vpack.c.b16 %v1485, %v1483
    %v1668 = vpack.c.b16 %v1488, %v1486
    %v1669 = vpack.c.b16 %v1489, %v1487
    %v1670 = vpack.c.b16 %v1492, %v1490
    %v1671 = vpack.c.b16 %v1493, %v1491
    %v1672 = vpack.c.b16 %v1496, %v1494
    %v1673 = vpack.c.b16 %v1497, %v1495
    %v1674 = vpack.c.b16 %v1500, %v1498
    %v1675 = vpack.c.b16 %v1501, %v1499
    %v1676 = vpack.c.b16 %v1504, %v1502
    %v1677 = vpack.c.b16 %v1505, %v1503
    %v1678 = vpack.c.b16 %v1508, %v1506
    %v1679 = vpack.c.b16 %v1509, %v1507
    %v1680 = vpack.c.b16 %v1512, %v1510
    %v1681 = vpack.c.b16 %v1513, %v1511
    %v1682 = vpack.c.b16 %v1516, %v1514
    %v1683 = vpack.c.b16 %v1517, %v1515
    %v1684 = vpack.c.b16 %v1520, %v1518
    %v1685 = vpack.c.b16 %v1521, %v1519
    %v1686 = vpack.c.b16 %v1524, %v1522
    %v1687 = vpack.c.b16 %v1525, %v1523
    %v1688 = vpack.c.b16 %v1528, %v1526
    %v1689 = vpack.c.b16 %v1529, %v1527
    %v1690 = vpack.c.b16 %v1532, %v1530
    %v1691 = vpack.c.b16 %v1533, %v1531
    %v1692 = vpack.c.b16 %v1536, %v1534
    %v1693 = vpack.c.b16 %v1537, %v1535
    %v1694 = vpack.c.b16 %v1540, %v1538
    %v1695 = vpack.c.b16 %v1541, %v1539
    %v1696 = vpack.c.b16 %v1544, %v1542
    %v1697 = vpack.c.b16 %v1545, %v1543
    %v1698 = vpack.c.b16 %v1548, %v1546
    %v1699 = vpack.c.b16 %v1549, %v1547
    %v1700 = vpack.c.b16 %v1552, %v1550
    %v1701 = vpack.c.b16 %v1553, %v1551
    %v1702 = vpack.c.b16 %v1556, %v1554
    %v1703 = vpack.c.b16 %v1557, %v1555
    %v1704 = vpack.c.b16 %v1560, %v1558
    %v1705 = vpack.c.b16 %v1561, %v1559
    %v1706 = vpack.c.b16 %v1564, %v1562
    %v1707 = vpack.c.b16 %v1565, %v1563
    %v1708 = vpack.c.b16 %v1568, %v1566
    %v1709 = vpack.c.b16 %v1569, %v1567
    %v1710 = vpack.c.b16 %v1572, %v1570
    %v1711 = vpack.c.b16 %v1573, %v1571
    %v1712 = vpack.c.b16 %v1576, %v1574
    %v1713 = vpack.c.b16 %v1577, %v1575
    %v1714 = vpack.c.b16 %v1580, %v1578
    %v1715 = vpack.c.b16 %v1581, %v1579
    %v1716 = vpack.c.b16 %v1584, %v1582
    %v1717 = vpack.c.b16 %v1585, %v1583
    %v1718 = vpack.c.b16 %v1588, %v1586
    %v1719 = vpack.c.b16 %v1589, %v1587
    %v1720 = vpack.c.b16 %v1592, %v1590
    %v1721 = vpack.c.b16 %v1593, %v1591
    %v1722 = vpack.c.b16 %v1596, %v1594
    %v1723 = vpack.c.b16 %v1597, %v1595
    %v1724 = vpack.c.b16 %v1600, %v1598
    %v1725 = vpack.c.b16 %v1601, %v1599
    %v1726 = vpack.c.b16 %v1604, %v1602
    %v1727 = vpack.c.b16 %v1605, %v1603
    %v1728 = vpack.c.b16 %v1608, %v1606
    %v1729 = vpack.c.b16 %v1609, %v1607
    %v1730 = vpack.c.b16 %v1612, %v1610
    %v1731 = vpack.c.b16 %v1613, %v1611
    %v1732 = vpack.c.b16 %v1616, %v1614
    %v1733 = vpack.c.b16 %v1617, %v1615
    %v1734 = vpack.c.b16 %v1620, %v1618
    %v1735 = vpack.c.b16 %v1621, %v1619
    %v1736 = vpack.c.b16 %v1624, %v1622
    %v1737 = vpack.c.b16 %v1625, %v1623
    %v1738 = vpack.c.b16 %v1628, %v1626
    %v1739 = vpack.c.b16 %v1629, %v1627
    %v1740 = vpack.c.b16 %v1632, %v1630
    %v1741 = vpack.c.b16 %v1633, %v1631
    %v1742 = vpack.c.b16 %v1636, %v1634
    %v1743 = vpack.c.b16 %v1637, %v1635
    %v1744 = vpack.c.b16 %v1640, %v1638
    %v1745 = vpack.c.b16 %v1641, %v1639
    %v1746 = vpack.c.b16 %v1644, %v1642
    %v1747 = vpack.c.b16 %v1645, %v1643
    %v1748 = vpack.c.b16 %v1648, %v1646
    %v1749 = vpack.c.b16 %v1649, %v1647
    %v1750 = vpack.c.b16 %v1652, %v1650
    %v1751 = vpack.c.b16 %v1653, %v1651
    %v1752 = vpack.c.b16 %v1656, %v1654
    %v1753 = vpack.c.b16 %v1657, %v1655
    %1850 = vmatpush.bf16.msra.mxu0 %v1672
    %1851 = vmatpush.bf16.msra.mxu0 %v1670
    %1852 = vmatpush.bf16.msra.mxu0 %v1668
    %1853 = vmatpush.bf16.msra.mxu0 %v1666
    %1854 = vmatpush.bf16.msra.mxu0 %v1664
    %1855 = vmatpush.bf16.msra.mxu0 %v1662
    %1856 = vmatpush.bf16.msra.mxu0 %v1660
    %1857 = vmatpush.bf16.msra.mxu0 %v1658
    %1858 = vmatmul.bf16.gmra.mxu0 %v1268
    %v1859 = vpop.f32.mrf.mxu0
    %v1860 = vadd.f32 0.0, %v1859
    %v1861 = vpop.f32.mrf.mxu0
    %1862 = vdwg.mxu0
    %1863 = vmatpush.bf16.msra.mxu0 %v1688
    %1864 = vmatpush.bf16.msra.mxu0 %v1686
    %1865 = vmatpush.bf16.msra.mxu0 %v1684
    %1866 = vmatpush.bf16.msra.mxu0 %v1682
    %1867 = vmatpush.bf16.msra.mxu0 %v1680
    %1868 = vmatpush.bf16.msra.mxu0 %v1678
    %1869 = vmatpush.bf16.msra.mxu0 %v1676
    %1870 = vmatpush.bf16.msra.mxu0 %v1674
    %1871 = vmatmul.bf16.gmra.mxu0 %v1269
    %v1872 = vpop.f32.mrf.mxu0
    %v1873 = vadd.f32 %v1860, %v1872
    %v1874 = vpop.f32.mrf.mxu0
    %1875 = vdwg.mxu0
    %1876 = vmatpush.bf16.msra.mxu0 %v1704
    %1877 = vmatpush.bf16.msra.mxu0 %v1702
    %1878 = vmatpush.bf16.msra.mxu0 %v1700
    %1879 = vmatpush.bf16.msra.mxu0 %v1698
    %1880 = vmatpush.bf16.msra.mxu0 %v1696
    %1881 = vmatpush.bf16.msra.mxu0 %v1694
    %1882 = vmatpush.bf16.msra.mxu0 %v1692
    %1883 = vmatpush.bf16.msra.mxu0 %v1690
    %1884 = vmatmul.bf16.gmra.mxu0 %v1270
    %v1885 = vpop.f32.mrf.mxu0
    %v1886 = vadd.f32 %v1873, %v1885
    %v1887 = vpop.f32.mrf.mxu0
    %1888 = vdwg.mxu0
    %1889 = vmatpush.bf16.msra.mxu0 %v1720
    %1890 = vmatpush.bf16.msra.mxu0 %v1718
    %1891 = vmatpush.bf16.msra.mxu0 %v1716
    %1892 = vmatpush.bf16.msra.mxu0 %v1714
    %1893 = vmatpush.bf16.msra.mxu0 %v1712
    %1894 = vmatpush.bf16.msra.mxu0 %v1710
    %1895 = vmatpush.bf16.msra.mxu0 %v1708
    %1896 = vmatpush.bf16.msra.mxu0 %v1706
    %1897 = vmatmul.bf16.gmra.mxu0 %v1271
    %v1898 = vpop.f32.mrf.mxu0
    %v1899 = vadd.f32 %v1886, %v1898
    %v1900 = vpop.f32.mrf.mxu0
    %1901 = vdwg.mxu0
    %1902 = vmatpush.bf16.msra.mxu0 %v1736
    %1903 = vmatpush.bf16.msra.mxu0 %v1734
    %1904 = vmatpush.bf16.msra.mxu0 %v1732
    %1905 = vmatpush.bf16.msra.mxu0 %v1730
    %1906 = vmatpush.bf16.msra.mxu0 %v1728
    %1907 = vmatpush.bf16.msra.mxu0 %v1726
    %1908 = vmatpush.bf16.msra.mxu0 %v1724
    %1909 = vmatpush.bf16.msra.mxu0 %v1722
    %1910 = vmatmul.bf16.gmra.mxu0 %v1272
    %v1911 = vpop.f32.mrf.mxu0
    %v1912 = vadd.f32 %v1899, %v1911
    %v1913 = vpop.f32.mrf.mxu0
    %1914 = vdwg.mxu0
    %1915 = vmatpush.bf16.msra.mxu0 %v1752
    %1916 = vmatpush.bf16.msra.mxu0 %v1750
    %1917 = vmatpush.bf16.msra.mxu0 %v1748
    %1918 = vmatpush.bf16.msra.mxu0 %v1746
    %1919 = vmatpush.bf16.msra.mxu0 %v1744
    %1920 = vmatpush.bf16.msra.mxu0 %v1742
    %1921 = vmatpush.bf16.msra.mxu0 %v1740
    %1922 = vmatpush.bf16.msra.mxu0 %v1738
    %1923 = vmatmul.bf16.gmra.mxu0 %v1273
    %v1924 = vpop.f32.mrf.mxu0
    %v1925 = vadd.f32 %v1912, %v1924
    %v1926 = vpop.f32.mrf.mxu0
    %1927 = vdwg.mxu0
    %1928 = vmatpush.bf16.msra.mxu0 %v1673
    %1929 = vmatpush.bf16.msra.mxu0 %v1671
    %1930 = vmatpush.bf16.msra.mxu0 %v1669
    %1931 = vmatpush.bf16.msra.mxu0 %v1667
    %1932 = vmatpush.bf16.msra.mxu0 %v1665
    %1933 = vmatpush.bf16.msra.mxu0 %v1663
    %1934 = vmatpush.bf16.msra.mxu0 %v1661
    %1935 = vmatpush.bf16.msra.mxu0 %v1659
    %1936 = vmatmul.bf16.gmra.mxu0 %v1268
    %v1937 = vpop.f32.mrf.mxu0
    %v1938 = vadd.f32 0.0, %v1937
    %v1939 = vpop.f32.mrf.mxu0
    %1940 = vdwg.mxu0
    %1941 = vmatpush.bf16.msra.mxu0 %v1689
    %1942 = vmatpush.bf16.msra.mxu0 %v1687
    %1943 = vmatpush.bf16.msra.mxu0 %v1685
    %1944 = vmatpush.bf16.msra.mxu0 %v1683
    %1945 = vmatpush.bf16.msra.mxu0 %v1681
    %1946 = vmatpush.bf16.msra.mxu0 %v1679
    %1947 = vmatpush.bf16.msra.mxu0 %v1677
    %1948 = vmatpush.bf16.msra.mxu0 %v1675
    %1949 = vmatmul.bf16.gmra.mxu0 %v1269
    %v1950 = vpop.f32.mrf.mxu0
    %v1951 = vadd.f32 %v1938, %v1950
    %v1952 = vpop.f32.mrf.mxu0
    %1953 = vdwg.mxu0
    %1954 = vmatpush.bf16.msra.mxu0 %v1705
    %1955 = vmatpush.bf16.msra.mxu0 %v1703
    %1956 = vmatpush.bf16.msra.mxu0 %v1701
    %1957 = vmatpush.bf16.msra.mxu0 %v1699
    %1958 = vmatpush.bf16.msra.mxu0 %v1697
    %1959 = vmatpush.bf16.msra.mxu0 %v1695
    %1960 = vmatpush.bf16.msra.mxu0 %v1693
    %1961 = vmatpush.bf16.msra.mxu0 %v1691
    %1962 = vmatmul.bf16.gmra.mxu0 %v1270
    %v1963 = vpop.f32.mrf.mxu0
    %v1964 = vadd.f32 %v1951, %v1963
    %v1965 = vpop.f32.mrf.mxu0
    %1966 = vdwg.mxu0
    %1967 = vmatpush.bf16.msra.mxu0 %v1721
    %1968 = vmatpush.bf16.msra.mxu0 %v1719
    %1969 = vmatpush.bf16.msra.mxu0 %v1717
    %1970 = vmatpush.bf16.msra.mxu0 %v1715
    %1971 = vmatpush.bf16.msra.mxu0 %v1713
    %1972 = vmatpush.bf16.msra.mxu0 %v1711
    %1973 = vmatpush.bf16.msra.mxu0 %v1709
    %1974 = vmatpush.bf16.msra.mxu0 %v1707
    %1975 = vmatmul.bf16.gmra.mxu0 %v1271
    %v1976 = vpop.f32.mrf.mxu0
    %v1977 = vadd.f32 %v1964, %v1976
    %v1978 = vpop.f32.mrf.mxu0
    %1979 = vdwg.mxu0
    %1980 = vmatpush.bf16.msra.mxu0 %v1737
    %1981 = vmatpush.bf16.msra.mxu0 %v1735
    %1982 = vmatpush.bf16.msra.mxu0 %v1733
    %1983 = vmatpush.bf16.msra.mxu0 %v1731
    %1984 = vmatpush.bf16.msra.mxu0 %v1729
    %1985 = vmatpush.bf16.msra.mxu0 %v1727
    %1986 = vmatpush.bf16.msra.mxu0 %v1725
    %1987 = vmatpush.bf16.msra.mxu0 %v1723
    %1988 = vmatmul.bf16.gmra.mxu0 %v1272
    %v1989 = vpop.f32.mrf.mxu0
    %v1990 = vadd.f32 %v1977, %v1989
    %v1991 = vpop.f32.mrf.mxu0
    %1992 = vdwg.mxu0
    %1993 = vmatpush.bf16.msra.mxu0 %v1753
    %1994 = vmatpush.bf16.msra.mxu0 %v1751
    %1995 = vmatpush.bf16.msra.mxu0 %v1749
    %1996 = vmatpush.bf16.msra.mxu0 %v1747
    %1997 = vmatpush.bf16.msra.mxu0 %v1745
    %1998 = vmatpush.bf16.msra.mxu0 %v1743
    %1999 = vmatpush.bf16.msra.mxu0 %v1741
    %2000 = vmatpush.bf16.msra.mxu0 %v1739
    %2001 = vmatmul.bf16.gmra.mxu0 %v1273
    %v2002 = vpop.f32.mrf.mxu0
    %v2003 = vadd.f32 %v1990, %v2002
    %v2004 = vpop.f32.mrf.mxu0
    %2005 = vdwg.mxu0
    %v2006 = vpack.c.bf16 %v1184, %v1184
    %v2007 = vpack.c.bf16 %v1197, %v1197
    %v2008 = vpack.c.bf16 %v1210, %v1210
    %v2009 = vpack.c.bf16 %v1223, %v1223
    %v2010 = vpack.c.bf16 %v1236, %v1236
    %v2011 = vpack.c.bf16 %v1249, %v1249
    %2012 = vmatpush.bf16.msra.mxu0 %v1672
    %2013 = vmatpush.bf16.msra.mxu0 %v1670
    %2014 = vmatpush.bf16.msra.mxu0 %v1668
    %2015 = vmatpush.bf16.msra.mxu0 %v1666
    %2016 = vmatpush.bf16.msra.mxu0 %v1664
    %2017 = vmatpush.bf16.msra.mxu0 %v1662
    %2018 = vmatpush.bf16.msra.mxu0 %v1660
    %2019 = vmatpush.bf16.msra.mxu0 %v1658
    %2020 = vmatmul.bf16.gmra.mxu0 %v2006
    %v2021 = vpop.f32.mrf.mxu0
    %v2022 = vadd.f32 0.0, %v2021
    %v2023 = vpop.f32.mrf.mxu0
    %2024 = vdwg.mxu0
    %2025 = vmatpush.bf16.msra.mxu0 %v1688
    %2026 = vmatpush.bf16.msra.mxu0 %v1686
    %2027 = vmatpush.bf16.msra.mxu0 %v1684
    %2028 = vmatpush.bf16.msra.mxu0 %v1682
    %2029 = vmatpush.bf16.msra.mxu0 %v1680
    %2030 = vmatpush.bf16.msra.mxu0 %v1678
    %2031 = vmatpush.bf16.msra.mxu0 %v1676
    %2032 = vmatpush.bf16.msra.mxu0 %v1674
    %2033 = vmatmul.bf16.gmra.mxu0 %v2007
    %v2034 = vpop.f32.mrf.mxu0
    %v2035 = vadd.f32 %v2022, %v2034
    %v2036 = vpop.f32.mrf.mxu0
    %2037 = vdwg.mxu0
    %2038 = vmatpush.bf16.msra.mxu0 %v1704
    %2039 = vmatpush.bf16.msra.mxu0 %v1702
    %2040 = vmatpush.bf16.msra.mxu0 %v1700
    %2041 = vmatpush.bf16.msra.mxu0 %v1698
    %2042 = vmatpush.bf16.msra.mxu0 %v1696
    %2043 = vmatpush.bf16.msra.mxu0 %v1694
    %2044 = vmatpush.bf16.msra.mxu0 %v1692
    %2045 = vmatpush.bf16.msra.mxu0 %v1690
    %2046 = vmatmul.bf16.gmra.mxu0 %v2008
    %v2047 = vpop.f32.mrf.mxu0
    %v2048 = vadd.f32 %v2035, %v2047
    %v2049 = vpop.f32.mrf.mxu0
    %2050 = vdwg.mxu0
    %2051 = vmatpush.bf16.msra.mxu0 %v1720
    %2052 = vmatpush.bf16.msra.mxu0 %v1718
    %2053 = vmatpush.bf16.msra.mxu0 %v1716
    %2054 = vmatpush.bf16.msra.mxu0 %v1714
    %2055 = vmatpush.bf16.msra.mxu0 %v1712
    %2056 = vmatpush.bf16.msra.mxu0 %v1710
    %2057 = vmatpush.bf16.msra.mxu0 %v1708
    %2058 = vmatpush.bf16.msra.mxu0 %v1706
    %2059 = vmatmul.bf16.gmra.mxu0 %v2009
    %v2060 = vpop.f32.mrf.mxu0
    %v2061 = vadd.f32 %v2048, %v2060
    %v2062 = vpop.f32.mrf.mxu0
    %2063 = vdwg.mxu0
    %2064 = vmatpush.bf16.msra.mxu0 %v1736
    %2065 = vmatpush.bf16.msra.mxu0 %v1734
    %2066 = vmatpush.bf16.msra.mxu0 %v1732
    %2067 = vmatpush.bf16.msra.mxu0 %v1730
    %2068 = vmatpush.bf16.msra.mxu0 %v1728
    %2069 = vmatpush.bf16.msra.mxu0 %v1726
    %2070 = vmatpush.bf16.msra.mxu0 %v1724
    %2071 = vmatpush.bf16.msra.mxu0 %v1722
    %2072 = vmatmul.bf16.gmra.mxu0 %v2010
    %v2073 = vpop.f32.mrf.mxu0
    %v2074 = vadd.f32 %v2061, %v2073
    %v2075 = vpop.f32.mrf.mxu0
    %2076 = vdwg.mxu0
    %2077 = vmatpush.bf16.msra.mxu0 %v1752
    %2078 = vmatpush.bf16.msra.mxu0 %v1750
    %2079 = vmatpush.bf16.msra.mxu0 %v1748
    %2080 = vmatpush.bf16.msra.mxu0 %v1746
    %2081 = vmatpush.bf16.msra.mxu0 %v1744
    %2082 = vmatpush.bf16.msra.mxu0 %v1742
    %2083 = vmatpush.bf16.msra.mxu0 %v1740
    %2084 = vmatpush.bf16.msra.mxu0 %v1738
    %2085 = vmatmul.bf16.gmra.mxu0 %v2011
    %v2086 = vpop.f32.mrf.mxu0
    %v2087 = vadd.f32 %v2074, %v2086
    %v2088 = vpop.f32.mrf.mxu0
    %2089 = vdwg.mxu0
    %2090 = vmatpush.bf16.msra.mxu0 %v1673
    %2091 = vmatpush.bf16.msra.mxu0 %v1671
    %2092 = vmatpush.bf16.msra.mxu0 %v1669
    %2093 = vmatpush.bf16.msra.mxu0 %v1667
    %2094 = vmatpush.bf16.msra.mxu0 %v1665
    %2095 = vmatpush.bf16.msra.mxu0 %v1663
    %2096 = vmatpush.bf16.msra.mxu0 %v1661
    %2097 = vmatpush.bf16.msra.mxu0 %v1659
    %2098 = vmatmul.bf16.gmra.mxu0 %v2006
    %v2099 = vpop.f32.mrf.mxu0
    %v2100 = vadd.f32 0.0, %v2099
    %v2101 = vpop.f32.mrf.mxu0
    %2102 = vdwg.mxu0
    %2103 = vmatpush.bf16.msra.mxu0 %v1689
    %2104 = vmatpush.bf16.msra.mxu0 %v1687
    %2105 = vmatpush.bf16.msra.mxu0 %v1685
    %2106 = vmatpush.bf16.msra.mxu0 %v1683
    %2107 = vmatpush.bf16.msra.mxu0 %v1681
    %2108 = vmatpush.bf16.msra.mxu0 %v1679
    %2109 = vmatpush.bf16.msra.mxu0 %v1677
    %2110 = vmatpush.bf16.msra.mxu0 %v1675
    %2111 = vmatmul.bf16.gmra.mxu0 %v2007
    %v2112 = vpop.f32.mrf.mxu0
    %v2113 = vadd.f32 %v2100, %v2112
    %v2114 = vpop.f32.mrf.mxu0
    %2115 = vdwg.mxu0
    %2116 = vmatpush.bf16.msra.mxu0 %v1705
    %2117 = vmatpush.bf16.msra.mxu0 %v1703
    %2118 = vmatpush.bf16.msra.mxu0 %v1701
    %2119 = vmatpush.bf16.msra.mxu0 %v1699
    %2120 = vmatpush.bf16.msra.mxu0 %v1697
    %2121 = vmatpush.bf16.msra.mxu0 %v1695
    %2122 = vmatpush.bf16.msra.mxu0 %v1693
    %2123 = vmatpush.bf16.msra.mxu0 %v1691
    %2124 = vmatmul.bf16.gmra.mxu0 %v2008
    %v2125 = vpop.f32.mrf.mxu0
    %v2126 = vadd.f32 %v2113, %v2125
    %v2127 = vpop.f32.mrf.mxu0
    %2128 = vdwg.mxu0
    %2129 = vmatpush.bf16.msra.mxu0 %v1721
    %2130 = vmatpush.bf16.msra.mxu0 %v1719
    %2131 = vmatpush.bf16.msra.mxu0 %v1717
    %2132 = vmatpush.bf16.msra.mxu0 %v1715
    %2133 = vmatpush.bf16.msra.mxu0 %v1713
    %2134 = vmatpush.bf16.msra.mxu0 %v1711
    %2135 = vmatpush.bf16.msra.mxu0 %v1709
    %2136 = vmatpush.bf16.msra.mxu0 %v1707
    %2137 = vmatmul.bf16.gmra.mxu0 %v2009
    %v2138 = vpop.f32.mrf.mxu0
    %v2139 = vadd.f32 %v2126, %v2138
    %v2140 = vpop.f32.mrf.mxu0
    %2141 = vdwg.mxu0
    %2142 = vmatpush.bf16.msra.mxu0 %v1737
    %2143 = vmatpush.bf16.msra.mxu0 %v1735
    %2144 = vmatpush.bf16.msra.mxu0 %v1733
    %2145 = vmatpush.bf16.msra.mxu0 %v1731
    %2146 = vmatpush.bf16.msra.mxu0 %v1729
    %2147 = vmatpush.bf16.msra.mxu0 %v1727
    %2148 = vmatpush.bf16.msra.mxu0 %v1725
    %2149 = vmatpush.bf16.msra.mxu0 %v1723
    %2150 = vmatmul.bf16.gmra.mxu0 %v2010
    %v2151 = vpop.f32.mrf.mxu0
    %v2152 = vadd.f32 %v2139, %v2151
    %v2153 = vpop.f32.mrf.mxu0
    %2154 = vdwg.mxu0
    %2155 = vmatpush.bf16.msra.mxu0 %v1753
    %2156 = vmatpush.bf16.msra.mxu0 %v1751
    %2157 = vmatpush.bf16.msra.mxu0 %v1749
    %2158 = vmatpush.bf16.msra.mxu0 %v1747
    %2159 = vmatpush.bf16.msra.mxu0 %v1745
    %2160 = vmatpush.bf16.msra.mxu0 %v1743
    %2161 = vmatpush.bf16.msra.mxu0 %v1741
    %2162 = vmatpush.bf16.msra.mxu0 %v1739
    %2163 = vmatmul.bf16.gmra.mxu0 %v2011
    %v2164 = vpop.f32.mrf.mxu0
    %v2165 = vadd.f32 %v2152, %v2164
    %v2166 = vpop.f32.mrf.mxu0
    %2167 = vdwg.mxu0
    %v2168 = vld [vmem:[%s6] sm:$0x3]
    %v2169 = vmul.f32 %v1925, %v1925
    %2170 = vadd.xlane.f32.xlu0 %v2169
    %v2171 = vpop.xlane.xlu0 %2170
    %v2172 = vadd.f32 %v2171, 1e-08
    %v2173 = vrsqrt.pop %v2172
    %v2174 = vmul.f32 %v2173, %v2172
    %v2175 = vmul.f32 %v2174, %v2173
    %v2176 = vmul.f32 0.5, %v2175
    %v2177 = vsub.f32 1.5, %v2176
    %v2178 = vmul.f32 %v2173, %v2177
    %vm2179 = vweird.f32 %v2172
    %vm2180 = vweird.f32 %v2173
    %vm2181 = vmor %vm2179, %vm2180
    %v2182 = vsel %vm2181, %v2173, %v2178
    %v2183 = vmul.f32 %v1925, %v2182
    %v2184 = vmul.f32 %v2087, %v2087
    %2185 = vadd.xlane.f32.xlu0 %v2184
    %v2186 = vpop.xlane.xlu0 %2185
    %v2187 = vadd.f32 %v2186, 1e-08
    %v2188 = vrsqrt.pop %v2187
    %v2189 = vmul.f32 %v2188, %v2187
    %v2190 = vmul.f32 %v2189, %v2188
    %v2191 = vmul.f32 0.5, %v2190
    %v2192 = vsub.f32 1.5, %v2191
    %v2193 = vmul.f32 %v2188, %v2192
    %vm2194 = vweird.f32 %v2187
    %vm2195 = vweird.f32 %v2188
    %vm2196 = vmor %vm2194, %vm2195
    %v2197 = vsel %vm2196, %v2188, %v2193
    %v2198 = vmul.f32 %v2087, %v2197
    %v2199 = vsub.f32 %v2198, %v2183
    %v2200 = vmul.f32 %v2199, %v2199
    %2201 = vadd.xlane.f32.xlu0 %v2200
    %v2202 = vpop.xlane.xlu0 %2201
    %v2203 = vadd.f32 %v2202, 1e-08
    %v2204 = vrsqrt.pop %v2203
    %v2205 = vmul.f32 %v2204, %v2203
    %v2206 = vmul.f32 %v2205, %v2204
    %v2207 = vmul.f32 0.5, %v2206
    %v2208 = vsub.f32 1.5, %v2207
    %v2209 = vmul.f32 %v2204, %v2208
    %vm2210 = vweird.f32 %v2203
    %vm2211 = vweird.f32 %v2204
    %vm2212 = vmor %vm2210, %vm2211
    %v2213 = vsel %vm2212, %v2204, %v2209
    %v2214 = vmul.f32 %v2199, %v2213
    %v2215 = vperm.slane %v2168, 0
    %v2216 = vmul.f32 %v2214, %v2215
    %2217 = vadd.xlane.f32.xlu0 %v2216
    %v2218 = vpop.xlane.xlu0 %2217
    %v2219 = vsub.f32 1.0, %v2218
    %v2220 = vrot.slane %v2219, 4
    %v2221 = vadd.f32 %v2219, %v2220
    %v2222 = vrot.slane %v2221, 2
    %v2223 = vadd.f32 %v2221, %v2222
    %v2224 = vrot.slane %v2223, 1
    %v2225 = vadd.f32 %v2223, %v2224
    %v2226 = vmul.f32 %v2225, 0.125
    %v2227 = vadd.f32 %v2226, 0.0
    %v2228 = vmul.f32 %v2003, %v2003
    %2229 = vadd.xlane.f32.xlu0 %v2228
    %v2230 = vpop.xlane.xlu0 %2229
    %v2231 = vadd.f32 %v2230, 1e-08
    %v2232 = vrsqrt.pop %v2231
    %v2233 = vmul.f32 %v2232, %v2231
    %v2234 = vmul.f32 %v2233, %v2232
    %v2235 = vmul.f32 0.5, %v2234
    %v2236 = vsub.f32 1.5, %v2235
    %v2237 = vmul.f32 %v2232, %v2236
    %vm2238 = vweird.f32 %v2231
    %vm2239 = vweird.f32 %v2232
    %vm2240 = vmor %vm2238, %vm2239
    %v2241 = vsel %vm2240, %v2232, %v2237
    %v2242 = vmul.f32 %v2003, %v2241
    %v2243 = vmul.f32 %v2165, %v2165
    %2244 = vadd.xlane.f32.xlu0 %v2243
    %v2245 = vpop.xlane.xlu0 %2244
    %v2246 = vadd.f32 %v2245, 1e-08
    %v2247 = vrsqrt.pop %v2246
    %v2248 = vmul.f32 %v2247, %v2246
    %v2249 = vmul.f32 %v2248, %v2247
    %v2250 = vmul.f32 0.5, %v2249
    %v2251 = vsub.f32 1.5, %v2250
    %v2252 = vmul.f32 %v2247, %v2251
    %vm2253 = vweird.f32 %v2246
    %vm2254 = vweird.f32 %v2247
    %vm2255 = vmor %vm2253, %vm2254
    %v2256 = vsel %vm2255, %v2247, %v2252
    %v2257 = vmul.f32 %v2165, %v2256
    %v2258 = vsub.f32 %v2257, %v2242
    %v2259 = vmul.f32 %v2258, %v2258
    %2260 = vadd.xlane.f32.xlu0 %v2259
    %v2261 = vpop.xlane.xlu0 %2260
    %v2262 = vadd.f32 %v2261, 1e-08
    %v2263 = vrsqrt.pop %v2262
    %v2264 = vmul.f32 %v2263, %v2262
    %v2265 = vmul.f32 %v2264, %v2263
    %v2266 = vmul.f32 0.5, %v2265
    %v2267 = vsub.f32 1.5, %v2266
    %v2268 = vmul.f32 %v2263, %v2267
    %vm2269 = vweird.f32 %v2262
    %vm2270 = vweird.f32 %v2263
    %vm2271 = vmor %vm2269, %vm2270
    %v2272 = vsel %vm2271, %v2263, %v2268
    %v2273 = vmul.f32 %v2258, %v2272
    %v2274 = vperm.slane %v2168, 1
    %v2275 = vmul.f32 %v2273, %v2274
    %2276 = vadd.xlane.f32.xlu0 %v2275
    %v2277 = vpop.xlane.xlu0 %2276
    %v2278 = vsub.f32 1.0, %v2277
    %v2279 = vrot.slane %v2278, 4
    %v2280 = vadd.f32 %v2278, %v2279
    %v2281 = vrot.slane %v2280, 2
    %v2282 = vadd.f32 %v2280, %v2281
    %v2283 = vrot.slane %v2282, 1
    %v2284 = vadd.f32 %v2282, %v2283
    %v2285 = vmul.f32 %v2284, 0.125
    %v2286 = vmul.f32 %v2285, 0.5
    %v2287 = vadd.f32 %v2227, %v2286
    %2288 = vst [vmem:[#allocation16] sm:$0x1] %v2287
    // Predicated region
    $region46: #{tpu_custom_call.1} parent=1 // pred_check
      _
    $region47: #{tpu_custom_call.1} parent=1 // pred_check_branch
      %2290 = sbr.rel (0) target = $region49
    $region48: #{tpu_custom_call.1} parent=1 // pred_region
      %2292 = vsyncadd [#allocation7], 0
      %s2294 = sshll.u32 [#allocation13], 4
      %s2295 = int_to_ptr.vmem [resolvable:$true] %s2294
      %s2296 = sshll.u32 %s7, 4
      %s2297 = int_to_ptr.hbm [resolvable:$true] %s2296
      %2299 = dma.vmem_to_hbm [thread:$0]  %s2295, 768, %s2297, [#allocation7]
    $region49: #{tpu_custom_call.1} parent=1 // pred_fallthru
      _
    // Predicated region
    $region50: #{tpu_custom_call.1} parent=1 // pred_check
      _
    $region51: #{tpu_custom_call.1} parent=1 // pred_check_branch
      %2301 = sbr.rel (0) target = $region53
    $region52: #{tpu_custom_call.1} parent=1 // pred_region
      %2303 = vsyncadd [#allocation15], 0
      %s2305 = sshll.u32 [#allocation14], 4
      %s2306 = int_to_ptr.vmem [resolvable:$true] %s2305
      %s2307 = sshll.u32 %s8, 4
      %s2308 = int_to_ptr.hbm [resolvable:$true] %s2307
      %2310 = dma.vmem_to_hbm [thread:$0]  %s2306, 768, %s2308, [#allocation15]
    $region53: #{tpu_custom_call.1} parent=1 // pred_fallthru
      _
    // Predicated region
    $region54: #{tpu_custom_call.1} parent=1 // pred_check
      _
    $region55: #{tpu_custom_call.1} parent=1 // pred_check_branch
      %2312 = sbr.rel (0) target = $region57
    $region56: #{tpu_custom_call.1} parent=1 // pred_region
      %2314 = vsyncadd [#allocation15], 0
      %s2316 = sshll.u32 [#allocation16], 4
      %s2317 = int_to_ptr.vmem [resolvable:$true] %s2316
      %s2318 = sshll.u32 %s9, 4
      %s2319 = int_to_ptr.hbm [resolvable:$true] %s2318
      %2321 = dma.vmem_to_hbm [thread:$0]  %s2317, 16, %s2319, [#allocation15]
    $region57: #{tpu_custom_call.1} parent=1 // pred_fallthru
      _
    // Predicated region
    $region58: #{tpu_custom_call.1} parent=1 // pred_check
      _
    $region59: #{tpu_custom_call.1} parent=1 // pred_check_branch
      %2323 = sbr.rel (0) target = $region61
    $region60: #{tpu_custom_call.1} parent=1 // pred_region
      %2325 = dma.done [#allocation7], 768
    $region61: #{tpu_custom_call.1} parent=1 // pred_fallthru
      _
    // Predicated region
    $region62: #{tpu_custom_call.1} parent=1 // pred_check
      _
    $region63: #{tpu_custom_call.1} parent=1 // pred_check_branch
      %2327 = sbr.rel (0) target = $region65
    $region64: #{tpu_custom_call.1} parent=1 // pred_region
      %2329 = dma.done [#allocation15], 768
    $region65: #{tpu_custom_call.1} parent=1 // pred_fallthru
      _
    // Predicated region
    $region66: #{tpu_custom_call.1} parent=1 // pred_check
      _
    $region67: #{tpu_custom_call.1} parent=1 // pred_check_branch
      %2331 = sbr.rel (0) target = $region69
    $region68: #{tpu_custom_call.1} parent=1 // pred_region
      %2333 = dma.done [#allocation15], 16
    $region69: #{tpu_custom_call.1} parent=1 // pred_fallthru
      _
    %2334 = vsyncpa [#allocation6], 1
    %2335 = vsyncpa [#allocation9], 1
    %2336 = vsyncpa [#allocation12], 1
    %2337 = vsyncpa [#allocation7], 1
    %2338 = vsyncpa [#allocation15], 1
  %2339 = vsyncmov [#allocation4]
  %s2340 = vpop.sfrf %2339
  %p2341 = scmp.eq.s32.totalorder %s2340, 0
  %p2342 = pneg %p2341
  %2344 = shalt.err (%p2342)
  %s2345 = scalar_lea.sflag [#allocation4], 1
  %2346 = vsyncmov %s2345
  %s2347 = vpop.sfrf %2346
  %p2348 = scmp.eq.s32.totalorder %s2347, 0
  %p2349 = pneg %p2348
  %2351 = shalt.err (%p2349)

</llo_original>
